<compile_context>
chip_gen: v7x
topology: tpu7x:2x2x1
jax: 0.10.0
libtpu: 0.0.40
codegen_flags: <defaults>
</compile_context>

<pallas_src>
import functools

import jax
import jax.numpy as jnp
from jax import lax
from jax.experimental import pallas as pl
from jax.experimental.pallas import tpu as pltpu


def _round_up(v, m):
    return (v + m - 1) // m * m


# ----------------------------------------------------------------------------
# Pallas kernel 1: tiled out = act(x @ w + b), bf16 inputs, f32 accumulation.
# ----------------------------------------------------------------------------
def _mm_bias_act_kernel(x_ref, w_ref, b_ref, o_ref, acc_ref, *, relu):
    k = pl.program_id(2)

    @pl.when(k == 0)
    def _():
        acc_ref[...] = jnp.zeros_like(acc_ref)

    acc_ref[...] += jnp.dot(x_ref[...], w_ref[...],
                            preferred_element_type=jnp.float32)

    @pl.when(k == pl.num_programs(2) - 1)
    def _():
        out = acc_ref[...] + b_ref[...]          # (tm, tn) + (1, tn)
        if relu:
            out = jnp.maximum(out, 0.0)
        o_ref[...] = out.astype(o_ref.dtype)


def matmul_bias_act(x, w, b, relu):
    """x: (M, K) f32, w: (K, N) f32, b: (N,) f32 -> (M, N) f32."""
    M, K = x.shape
    K2, N = w.shape
    assert K == K2, (K, K2)

    # Tile selection (128-aligned lanes; sublane-aligned rows; small K fits in
    # a single resident step, e.g. conv3's K=576 is padded to 640).
    tm = min(256, _round_up(M, 8))
    tn = min(256, _round_up(N, 128))
    ku = _round_up(K, 128)
    tk = ku if ku <= 1024 else 512

    Mp, Np, Kp = _round_up(M, tm), _round_up(N, tn), _round_up(K, tk)

    xp = jnp.pad(x.astype(jnp.bfloat16), ((0, Mp - M), (0, Kp - K)))
    wp = jnp.pad(w.astype(jnp.bfloat16), ((0, Kp - K), (0, Np - N)))
    bp = jnp.pad(b.astype(jnp.float32), (0, Np - N)).reshape(1, Np)

    grid = (Mp // tm, Np // tn, Kp // tk)
    kernel = functools.partial(_mm_bias_act_kernel, relu=relu)

    out = pl.pallas_call(
        kernel,
        out_shape=jax.ShapeDtypeStruct((Mp, Np), jnp.float32),
        grid=grid,
        in_specs=[
            pl.BlockSpec((tm, tk), lambda i, j, k: (i, k)),
            pl.BlockSpec((tk, tn), lambda i, j, k: (k, j)),
            pl.BlockSpec((1, tn), lambda i, j, k: (0, j)),   # bias: resident
        ],
        out_specs=pl.BlockSpec((tm, tn), lambda i, j, k: (i, j)),
        scratch_shapes=[pltpu.VMEM((tm, tn), jnp.float32)],
        compiler_params=pltpu.CompilerParams(
            dimension_semantics=("parallel", "parallel", "arbitrary")),
    )(xp, wp, bp)
    return out[:M, :N]


# ----------------------------------------------------------------------------
# Pallas kernel 2: fused FC head  q = relu(x @ w1 + b1) @ w2 + b2
# (single pallas_call, both weights resident, K(cos) is the only grid axis)
# ----------------------------------------------------------------------------
def _fc_head_kernel(x_ref, w1_ref, b1_ref, w2_ref, b2_ref, o_ref, h_ref):
    k = pl.program_id(0)

    @pl.when(k == 0)
    def _():
        h_ref[...] = jnp.zeros_like(h_ref)

    h_ref[...] += jnp.dot(x_ref[...], w1_ref[...],
                          preferred_element_type=jnp.float32)

    @pl.when(k == pl.num_programs(0) - 1)
    def _():
        h = jnp.maximum(h_ref[...] + b1_ref[...], 0.0)
        out = jnp.dot(h.astype(jnp.bfloat16), w2_ref[...],
                      preferred_element_type=jnp.float32)
        o_ref[...] = out + b2_ref[...]


def fc_head(x, w1, b1, w2, b2):
    """x: (B, cos), w1: (cos, 512), w2: (512, n_actions) -> (B, n_actions)."""
    M, K = x.shape
    _, H = w1.shape
    _, N = w2.shape

    Mp = _round_up(M, 8)
    tk = min(512, _round_up(K, 128))
    Kp = _round_up(K, tk)
    Np = _round_up(N, 128)                 # lane-dense head output

    xp = jnp.pad(x.astype(jnp.bfloat16), ((0, Mp - M), (0, Kp - K)))
    w1p = jnp.pad(w1.astype(jnp.bfloat16), ((0, Kp - K), (0, 0)))
    b1p = b1.astype(jnp.float32).reshape(1, H)
    w2p = jnp.pad(w2.astype(jnp.bfloat16), ((0, 0), (0, Np - N)))
    b2p = jnp.pad(b2.astype(jnp.float32), (0, Np - N)).reshape(1, Np)

    out = pl.pallas_call(
        _fc_head_kernel,
        out_shape=jax.ShapeDtypeStruct((Mp, Np), jnp.float32),
        grid=(Kp // tk,),
        in_specs=[
            pl.BlockSpec((Mp, tk), lambda k: (0, k)),
            pl.BlockSpec((tk, H), lambda k: (k, 0)),
            pl.BlockSpec((1, H), lambda k: (0, 0)),
            pl.BlockSpec((H, Np), lambda k: (0, 0)),
            pl.BlockSpec((1, Np), lambda k: (0, 0)),
        ],
        out_specs=pl.BlockSpec((Mp, Np), lambda k: (0, 0)),
        scratch_shapes=[pltpu.VMEM((Mp, H), jnp.float32)],
        compiler_params=pltpu.CompilerParams(
            dimension_semantics=("arbitrary",)),
    )(xp, w1p, b1p, w2p, b2p)
    return out[:M, :N]


# ----------------------------------------------------------------------------
# Conv via NHWC im2col (strided slice + concat, kernel-position-major) + matmul
# ----------------------------------------------------------------------------
def conv2d_relu_nhwc(x, w, b, stride):
    """x: (N, H, W, C) NHWC, w: (OC, IC, KH, KW) PyTorch layout, b: (OC,)."""
    N, H, W, C = x.shape
    OC, IC, KH, KW = w.shape
    assert IC == C
    OH = (H - KH) // stride + 1
    OW = (W - KW) // stride + 1

    cols = []
    for di in range(KH):
        for dj in range(KW):
            cols.append(x[:, di:di + stride * (OH - 1) + 1:stride,
                          dj:dj + stride * (OW - 1) + 1:stride, :])
    patches = jnp.concatenate(cols, axis=-1)            # (N, OH, OW, KH*KW*C)
    patches = patches.reshape(N * OH * OW, KH * KW * C)

    # Weight flattened to match (di, dj, c) ordering of the patches.
    w2 = jnp.transpose(w, (2, 3, 1, 0)).reshape(KH * KW * IC, OC)

    out = matmul_bias_act(patches, w2, b, relu=True)     # (N*OH*OW, OC)
    return out.reshape(N, OH, OW, OC)                    # stay NHWC


# ----------------------------------------------------------------------------
# DQN forward + deterministic parameter init (PyTorch layouts / semantics)
# ----------------------------------------------------------------------------
def conv_out_size(input_shape):
    c, h, w = input_shape
    h1, w1 = (h - 8) // 4 + 1, (w - 8) // 4 + 1
    h2, w2 = (h1 - 4) // 2 + 1, (w1 - 4) // 2 + 1
    h3, w3 = h2 - 2, w2 - 2
    return 64 * h3 * w3


def init_params(key, input_shape, n_actions):
    c = input_shape[0]
    cos = conv_out_size(input_shape)
    ks = jax.random.split(key, 10)

    def u(k, shape, fan_in):
        bound = 1.0 / float(fan_in) ** 0.5
        return jax.random.uniform(k, shape, jnp.float32, -bound, bound)

    return {
        "w1": u(ks[0], (32, c, 8, 8), c * 8 * 8),
        "b1": u(ks[1], (32,), c * 8 * 8),
        "w2": u(ks[2], (64, 32, 4, 4), 32 * 4 * 4),
        "b2": u(ks[3], (64,), 32 * 4 * 4),
        "w3": u(ks[4], (64, 64, 3, 3), 64 * 3 * 3),
        "b3": u(ks[5], (64,), 64 * 3 * 3),
        # FC weights stored as (in, out), rows in PyTorch NCHW-flatten order.
        "fw1": u(ks[6], (cos, 512), cos),
        "fb1": u(ks[7], (512,), cos),
        "fw2": u(ks[8], (512, n_actions), 512),
        "fb2": u(ks[9], (512,), 512)[:n_actions] if False else u(ks[9], (n_actions,), 512),
    }


def dqn_forward(params, x):
    """x: (B, C, H, W) NCHW (PyTorch convention)."""
    B = x.shape[0]
    h = jnp.transpose(x, (0, 2, 3, 1))                  # -> NHWC once
    h = conv2d_relu_nhwc(h, params["w1"], params["b1"], stride=4)
    h = conv2d_relu_nhwc(h, params["w2"], params["b2"], stride=2)
    h = conv2d_relu_nhwc(h, params["w3"], params["b3"], stride=1)

    _, H3, W3, C3 = h.shape
    flat = h.reshape(B, H3 * W3 * C3)                   # NHWC flatten
    # Permute fw1 rows once so NHWC flatten matches PyTorch's NCHW .view(B,-1).
    fw1 = params["fw1"].reshape(C3, H3, W3, 512)
    fw1 = jnp.transpose(fw1, (1, 2, 0, 3)).reshape(H3 * W3 * C3, 512)

    return fc_head(flat, fw1, params["fb1"], params["fw2"], params["fb2"])


def dqn_reference(params, x):
    """Pure-JAX f32 reference (lax.conv, NCHW) matching the PyTorch module."""
    def conv(x, w, b, s):
        y = lax.conv_general_dilated(
            x, w, (s, s), "VALID",
            dimension_numbers=("NCHW", "OIHW", "NCHW"))
        return jnp.maximum(y + b[None, :, None, None], 0.0)

    h = conv(x, params["w1"], params["b1"], 4)
    h = conv(h, params["w2"], params["b2"], 2)
    h = conv(h, params["w3"], params["b3"], 1)
    flat = h.reshape(x.shape[0], -1)
    h = jnp.maximum(flat @ params["fw1"] + params["fb1"], 0.0)
    return h @ params["fw2"] + params["fb2"]


if __name__ == "__main__":
    input_shape = (4, 36, 36)   # (C, H, W); 36x36 keeps all conv dims valid
    n_actions = 6
    batch = 2

    key = jax.random.PRNGKey(0)
    kx, kp = jax.random.split(key)
    x = jax.random.normal(kx, (batch,) + input_shape, dtype=jnp.float32)
    params = init_params(kp, input_shape, n_actions)

    q = jax.jit(dqn_forward)(params, x)
    q = jax.block_until_ready(q)
    assert q.shape == (batch, n_actions), q.shape

    q_ref = jax.block_until_ready(dqn_reference(params, x))
    # bf16 MXU inputs with f32 accumulation -> loosened tolerance.
    assert jnp.allclose(q, q_ref, rtol=5e-2, atol=5e-2), (
        float(jnp.max(jnp.abs(q - q_ref))))

    print("KERNEL_OK")
</pallas_src>

<mosaic_0001>
module attributes {stable_mosaic.version = 11 : i64} {
  func.func @_mm_bias_act_kernel(%arg0: i32, %arg1: i32, %arg2: i32, %arg3: memref<128x256xbf16, #tpu.memory_space<vmem>>, %arg4: memref<256x128xbf16, #tpu.memory_space<vmem>>, %arg5: memref<1x128xf32, #tpu.memory_space<vmem>>, %arg6: memref<128x128xf32, #tpu.memory_space<vmem>>, %arg7: memref<128x128xf32, #tpu.memory_space<vmem>>) attributes {dimension_semantics = [#tpu.dimension_semantics<parallel>, #tpu.dimension_semantics<parallel>, #tpu.dimension_semantics<arbitrary>], iteration_bounds = array<i64: 1, 1, 1>, scalar_prefetch = 0 : i64, scratch_operands = 1 : i64, tpu.core_type = #tpu.core_type<tc>, window_params = [{transform_indices = @transform_0, window_bounds = array<i64: 128, 256>}, {transform_indices = @transform_1, window_bounds = array<i64: 256, 128>}, {transform_indices = @transform_2, window_bounds = array<i64: 1, 128>}, {transform_indices = @transform_3, window_bounds = array<i64: 128, 128>}]} {
    %c0_i32 = arith.constant 0 : i32
    %0 = arith.cmpi eq, %arg2, %c0_i32 : i32
    %1 = arith.extui %0 : i1 to i32
    %c0_i32_0 = arith.constant 0 : i32
    %2 = arith.cmpi ne, %1, %c0_i32_0 : i32
    scf.if %2 {
      %cst_10 = arith.constant 0.000000e+00 : f32
      %12 = vector.broadcast %cst_10 : f32 to vector<128x128xf32>
      %c0_11 = arith.constant 0 : index
      %c0_12 = arith.constant 0 : index
      %13 = vector.load %arg7[%c0_11, %c0_12] : memref<128x128xf32, #tpu.memory_space<vmem>>, vector<128x128xf32>
      tpu.vector_store %arg7[%c0_11, %c0_12], %12 {strides = array<i32>} : memref<128x128xf32, #tpu.memory_space<vmem>>, vector<128x128xf32>,
    } else {
    }
    %c0 = arith.constant 0 : index
    %c0_1 = arith.constant 0 : index
    %3 = vector.load %arg7[%c0, %c0_1] : memref<128x128xf32, #tpu.memory_space<vmem>>, vector<128x128xf32>
    %c0_2 = arith.constant 0 : index
    %c0_3 = arith.constant 0 : index
    %4 = vector.load %arg3[%c0_2, %c0_3] : memref<128x256xbf16, #tpu.memory_space<vmem>>, vector<128x256xbf16>
    %c0_4 = arith.constant 0 : index
    %c0_5 = arith.constant 0 : index
    %5 = vector.load %arg4[%c0_4, %c0_5] : memref<256x128xbf16, #tpu.memory_space<vmem>>, vector<256x128xbf16>
    %cst = arith.constant dense<0.000000e+00> : vector<128x128xf32>
    %6 = tpu.matmul %4, %5, %cst {dimension_numbers = #tpu.dot_dimension_numbers<[1], [0], [0], [1], [0, 0, 1, 1], [], []>} : vector<128x256xbf16>, vector<256x128xbf16>, vector<128x128xf32> -> vector<128x128xf32>
    %7 = arith.addf %3, %6 : vector<128x128xf32>
    %c0_6 = arith.constant 0 : index
    %c0_7 = arith.constant 0 : index
    %8 = vector.load %arg7[%c0_6, %c0_7] : memref<128x128xf32, #tpu.memory_space<vmem>>, vector<128x128xf32>
    tpu.vector_store %arg7[%c0_6, %c0_7], %7 {strides = array<i32>} : memref<128x128xf32, #tpu.memory_space<vmem>>, vector<128x128xf32>,
    %c0_i32_8 = arith.constant 0 : i32
    %9 = arith.cmpi eq, %arg2, %c0_i32_8 : i32
    %10 = arith.extui %9 : i1 to i32
    %c0_i32_9 = arith.constant 0 : i32
    %11 = arith.cmpi ne, %10, %c0_i32_9 : i32
    scf.if %11 {
      %c0_10 = arith.constant 0 : index
      %c0_11 = arith.constant 0 : index
      %12 = vector.load %arg7[%c0_10, %c0_11] : memref<128x128xf32, #tpu.memory_space<vmem>>, vector<128x128xf32>
      %c0_12 = arith.constant 0 : index
      %c0_13 = arith.constant 0 : index
      %13 = vector.load %arg5[%c0_12, %c0_13] : memref<1x128xf32, #tpu.memory_space<vmem>>, vector<1x128xf32>
      %14 = vector.broadcast %13 : vector<1x128xf32> to vector<128x128xf32>
      %15 = arith.addf %12, %14 : vector<128x128xf32>
      %cst_14 = arith.constant 0.000000e+00 : f32
      %16 = vector.broadcast %cst_14 : f32 to vector<128x128xf32>
      %17 = arith.maximumf %15, %16 : vector<128x128xf32>
      %c0_15 = arith.constant 0 : index
      %c0_16 = arith.constant 0 : index
      %18 = vector.load %arg6[%c0_15, %c0_16] : memref<128x128xf32, #tpu.memory_space<vmem>>, vector<128x128xf32>
      tpu.vector_store %arg6[%c0_15, %c0_16], %17 {strides = array<i32>} : memref<128x128xf32, #tpu.memory_space<vmem>>, vector<128x128xf32>,
    } else {
    }
    return
  }
  func.func @transform_0(%arg0: i32, %arg1: i32, %arg2: i32) -> (i32, i32) {
    %c0_i32 = arith.constant 0 : i32
    return %arg0, %arg2 : i32, i32
  }
  func.func @transform_1(%arg0: i32, %arg1: i32, %arg2: i32) -> (i32, i32) {
    %c0_i32 = arith.constant 0 : i32
    return %arg2, %arg1 : i32, i32
  }
  func.func @transform_2(%arg0: i32, %arg1: i32, %arg2: i32) -> (i32, i32) {
    %c0_i32 = arith.constant 0 : i32
    %c0_i32_0 = arith.constant 0 : i32
    return %c0_i32, %arg1 : i32, i32
  }
  func.func @transform_3(%arg0: i32, %arg1: i32, %arg2: i32) -> (i32, i32) {
    %c0_i32 = arith.constant 0 : i32
    return %arg0, %arg1 : i32, i32
  }
}

module attributes {stable_mosaic.version = 11 : i64} {
  func.func @_mm_bias_act_kernel(%arg0: i32, %arg1: i32, %arg2: i32, %arg3: memref<24x512xbf16, #tpu.memory_space<vmem>>, %arg4: memref<512x128xbf16, #tpu.memory_space<vmem>>, %arg5: memref<1x128xf32, #tpu.memory_space<vmem>>, %arg6: memref<24x128xf32, #tpu.memory_space<vmem>>, %arg7: memref<24x128xf32, #tpu.memory_space<vmem>>) attributes {dimension_semantics = [#tpu.dimension_semantics<parallel>, #tpu.dimension_semantics<parallel>, #tpu.dimension_semantics<arbitrary>], iteration_bounds = array<i64: 1, 1, 1>, scalar_prefetch = 0 : i64, scratch_operands = 1 : i64, tpu.core_type = #tpu.core_type<tc>, window_params = [{transform_indices = @transform_0, window_bounds = array<i64: 24, 512>}, {transform_indices = @transform_1, window_bounds = array<i64: 512, 128>}, {transform_indices = @transform_2, window_bounds = array<i64: 1, 128>}, {transform_indices = @transform_3, window_bounds = array<i64: 24, 128>}]} {
    %c0_i32 = arith.constant 0 : i32
    %0 = arith.cmpi eq, %arg2, %c0_i32 : i32
    %1 = arith.extui %0 : i1 to i32
    %c0_i32_0 = arith.constant 0 : i32
    %2 = arith.cmpi ne, %1, %c0_i32_0 : i32
    scf.if %2 {
      %cst_10 = arith.constant 0.000000e+00 : f32
      %12 = vector.broadcast %cst_10 : f32 to vector<24x128xf32>
      %c0_11 = arith.constant 0 : index
      %c0_12 = arith.constant 0 : index
      %13 = vector.load %arg7[%c0_11, %c0_12] : memref<24x128xf32, #tpu.memory_space<vmem>>, vector<24x128xf32>
      tpu.vector_store %arg7[%c0_11, %c0_12], %12 {strides = array<i32>} : memref<24x128xf32, #tpu.memory_space<vmem>>, vector<24x128xf32>,
    } else {
    }
    %c0 = arith.constant 0 : index
    %c0_1 = arith.constant 0 : index
    %3 = vector.load %arg7[%c0, %c0_1] : memref<24x128xf32, #tpu.memory_space<vmem>>, vector<24x128xf32>
    %c0_2 = arith.constant 0 : index
    %c0_3 = arith.constant 0 : index
    %4 = vector.load %arg3[%c0_2, %c0_3] : memref<24x512xbf16, #tpu.memory_space<vmem>>, vector<24x512xbf16>
    %c0_4 = arith.constant 0 : index
    %c0_5 = arith.constant 0 : index
    %5 = vector.load %arg4[%c0_4, %c0_5] : memref<512x128xbf16, #tpu.memory_space<vmem>>, vector<512x128xbf16>
    %cst = arith.constant dense<0.000000e+00> : vector<24x128xf32>
    %6 = tpu.matmul %4, %5, %cst {dimension_numbers = #tpu.dot_dimension_numbers<[1], [0], [0], [1], [0, 0, 1, 1], [], []>} : vector<24x512xbf16>, vector<512x128xbf16>, vector<24x128xf32> -> vector<24x128xf32>
    %7 = arith.addf %3, %6 : vector<24x128xf32>
    %c0_6 = arith.constant 0 : index
    %c0_7 = arith.constant 0 : index
    %8 = vector.load %arg7[%c0_6, %c0_7] : memref<24x128xf32, #tpu.memory_space<vmem>>, vector<24x128xf32>
    tpu.vector_store %arg7[%c0_6, %c0_7], %7 {strides = array<i32>} : memref<24x128xf32, #tpu.memory_space<vmem>>, vector<24x128xf32>,
    %c0_i32_8 = arith.constant 0 : i32
    %9 = arith.cmpi eq, %arg2, %c0_i32_8 : i32
    %10 = arith.extui %9 : i1 to i32
    %c0_i32_9 = arith.constant 0 : i32
    %11 = arith.cmpi ne, %10, %c0_i32_9 : i32
    scf.if %11 {
      %c0_10 = arith.constant 0 : index
      %c0_11 = arith.constant 0 : index
      %12 = vector.load %arg7[%c0_10, %c0_11] : memref<24x128xf32, #tpu.memory_space<vmem>>, vector<24x128xf32>
      %c0_12 = arith.constant 0 : index
      %c0_13 = arith.constant 0 : index
      %13 = vector.load %arg5[%c0_12, %c0_13] : memref<1x128xf32, #tpu.memory_space<vmem>>, vector<1x128xf32>
      %14 = vector.broadcast %13 : vector<1x128xf32> to vector<24x128xf32>
      %15 = arith.addf %12, %14 : vector<24x128xf32>
      %cst_14 = arith.constant 0.000000e+00 : f32
      %16 = vector.broadcast %cst_14 : f32 to vector<24x128xf32>
      %17 = arith.maximumf %15, %16 : vector<24x128xf32>
      %c0_15 = arith.constant 0 : index
      %c0_16 = arith.constant 0 : index
      %18 = vector.load %arg6[%c0_15, %c0_16] : memref<24x128xf32, #tpu.memory_space<vmem>>, vector<24x128xf32>
      tpu.vector_store %arg6[%c0_15, %c0_16], %17 {strides = array<i32>} : memref<24x128xf32, #tpu.memory_space<vmem>>, vector<24x128xf32>,
    } else {
    }
    return
  }
  func.func @transform_0(%arg0: i32, %arg1: i32, %arg2: i32) -> (i32, i32) {
    %c0_i32 = arith.constant 0 : i32
    return %arg0, %arg2 : i32, i32
  }
  func.func @transform_1(%arg0: i32, %arg1: i32, %arg2: i32) -> (i32, i32) {
    %c0_i32 = arith.constant 0 : i32
    return %arg2, %arg1 : i32, i32
  }
  func.func @transform_2(%arg0: i32, %arg1: i32, %arg2: i32) -> (i32, i32) {
    %c0_i32 = arith.constant 0 : i32
    %c0_i32_0 = arith.constant 0 : i32
    return %c0_i32, %arg1 : i32, i32
  }
  func.func @transform_3(%arg0: i32, %arg1: i32, %arg2: i32) -> (i32, i32) {
    %c0_i32 = arith.constant 0 : i32
    return %arg0, %arg1 : i32, i32
  }
}

module attributes {stable_mosaic.version = 11 : i64} {
  func.func @_mm_bias_act_kernel(%arg0: i32, %arg1: i32, %arg2: i32, %arg3: memref<8x640xbf16, #tpu.memory_space<vmem>>, %arg4: memref<640x128xbf16, #tpu.memory_space<vmem>>, %arg5: memref<1x128xf32, #tpu.memory_space<vmem>>, %arg6: memref<8x128xf32, #tpu.memory_space<vmem>>, %arg7: memref<8x128xf32, #tpu.memory_space<vmem>>) attributes {dimension_semantics = [#tpu.dimension_semantics<parallel>, #tpu.dimension_semantics<parallel>, #tpu.dimension_semantics<arbitrary>], iteration_bounds = array<i64: 1, 1, 1>, scalar_prefetch = 0 : i64, scratch_operands = 1 : i64, tpu.core_type = #tpu.core_type<tc>, window_params = [{transform_indices = @transform_0, window_bounds = array<i64: 8, 640>}, {transform_indices = @transform_1, window_bounds = array<i64: 640, 128>}, {transform_indices = @transform_2, window_bounds = array<i64: 1, 128>}, {transform_indices = @transform_3, window_bounds = array<i64: 8, 128>}]} {
    %c0_i32 = arith.constant 0 : i32
    %0 = arith.cmpi eq, %arg2, %c0_i32 : i32
    %1 = arith.extui %0 : i1 to i32
    %c0_i32_0 = arith.constant 0 : i32
    %2 = arith.cmpi ne, %1, %c0_i32_0 : i32
    scf.if %2 {
      %cst_10 = arith.constant 0.000000e+00 : f32
      %12 = vector.broadcast %cst_10 : f32 to vector<8x128xf32>
      %c0_11 = arith.constant 0 : index
      %c0_12 = arith.constant 0 : index
      %13 = vector.load %arg7[%c0_11, %c0_12] : memref<8x128xf32, #tpu.memory_space<vmem>>, vector<8x128xf32>
      tpu.vector_store %arg7[%c0_11, %c0_12], %12 {strides = array<i32>} : memref<8x128xf32, #tpu.memory_space<vmem>>, vector<8x128xf32>,
    } else {
    }
    %c0 = arith.constant 0 : index
    %c0_1 = arith.constant 0 : index
    %3 = vector.load %arg7[%c0, %c0_1] : memref<8x128xf32, #tpu.memory_space<vmem>>, vector<8x128xf32>
    %c0_2 = arith.constant 0 : index
    %c0_3 = arith.constant 0 : index
    %4 = vector.load %arg3[%c0_2, %c0_3] : memref<8x640xbf16, #tpu.memory_space<vmem>>, vector<8x640xbf16>
    %c0_4 = arith.constant 0 : index
    %c0_5 = arith.constant 0 : index
    %5 = vector.load %arg4[%c0_4, %c0_5] : memref<640x128xbf16, #tpu.memory_space<vmem>>, vector<640x128xbf16>
    %cst = arith.constant dense<0.000000e+00> : vector<8x128xf32>
    %6 = tpu.matmul %4, %5, %cst {dimension_numbers = #tpu.dot_dimension_numbers<[1], [0], [0], [1], [0, 0, 1, 1], [], []>} : vector<8x640xbf16>, vector<640x128xbf16>, vector<8x128xf32> -> vector<8x128xf32>
    %7 = arith.addf %3, %6 : vector<8x128xf32>
    %c0_6 = arith.constant 0 : index
    %c0_7 = arith.constant 0 : index
    %8 = vector.load %arg7[%c0_6, %c0_7] : memref<8x128xf32, #tpu.memory_space<vmem>>, vector<8x128xf32>
    tpu.vector_store %arg7[%c0_6, %c0_7], %7 {strides = array<i32>} : memref<8x128xf32, #tpu.memory_space<vmem>>, vector<8x128xf32>,
    %c0_i32_8 = arith.constant 0 : i32
    %9 = arith.cmpi eq, %arg2, %c0_i32_8 : i32
    %10 = arith.extui %9 : i1 to i32
    %c0_i32_9 = arith.constant 0 : i32
    %11 = arith.cmpi ne, %10, %c0_i32_9 : i32
    scf.if %11 {
      %c0_10 = arith.constant 0 : index
      %c0_11 = arith.constant 0 : index
      %12 = vector.load %arg7[%c0_10, %c0_11] : memref<8x128xf32, #tpu.memory_space<vmem>>, vector<8x128xf32>
      %c0_12 = arith.constant 0 : index
      %c0_13 = arith.constant 0 : index
      %13 = vector.load %arg5[%c0_12, %c0_13] : memref<1x128xf32, #tpu.memory_space<vmem>>, vector<1x128xf32>
      %14 = vector.broadcast %13 : vector<1x128xf32> to vector<8x128xf32>
      %15 = arith.addf %12, %14 : vector<8x128xf32>
      %cst_14 = arith.constant 0.000000e+00 : f32
      %16 = vector.broadcast %cst_14 : f32 to vector<8x128xf32>
      %17 = arith.maximumf %15, %16 : vector<8x128xf32>
      %c0_15 = arith.constant 0 : index
      %c0_16 = arith.constant 0 : index
      %18 = vector.load %arg6[%c0_15, %c0_16] : memref<8x128xf32, #tpu.memory_space<vmem>>, vector<8x128xf32>
      tpu.vector_store %arg6[%c0_15, %c0_16], %17 {strides = array<i32>} : memref<8x128xf32, #tpu.memory_space<vmem>>, vector<8x128xf32>,
    } else {
    }
    return
  }
  func.func @transform_0(%arg0: i32, %arg1: i32, %arg2: i32) -> (i32, i32) {
    %c0_i32 = arith.constant 0 : i32
    return %arg0, %arg2 : i32, i32
  }
  func.func @transform_1(%arg0: i32, %arg1: i32, %arg2: i32) -> (i32, i32) {
    %c0_i32 = arith.constant 0 : i32
    return %arg2, %arg1 : i32, i32
  }
  func.func @transform_2(%arg0: i32, %arg1: i32, %arg2: i32) -> (i32, i32) {
    %c0_i32 = arith.constant 0 : i32
    %c0_i32_0 = arith.constant 0 : i32
    return %c0_i32, %arg1 : i32, i32
  }
  func.func @transform_3(%arg0: i32, %arg1: i32, %arg2: i32) -> (i32, i32) {
    %c0_i32 = arith.constant 0 : i32
    return %arg0, %arg1 : i32, i32
  }
}

module attributes {stable_mosaic.version = 11 : i64} {
  func.func @_fc_head_kernel(%arg0: i32, %arg1: memref<8x128xbf16, #tpu.memory_space<vmem>>, %arg2: memref<128x512xbf16, #tpu.memory_space<vmem>>, %arg3: memref<1x512xf32, #tpu.memory_space<vmem>>, %arg4: memref<512x128xbf16, #tpu.memory_space<vmem>>, %arg5: memref<1x128xf32, #tpu.memory_space<vmem>>, %arg6: memref<8x128xf32, #tpu.memory_space<vmem>>, %arg7: memref<8x512xf32, #tpu.memory_space<vmem>>) attributes {dimension_semantics = [#tpu.dimension_semantics<arbitrary>], iteration_bounds = array<i64: 1>, scalar_prefetch = 0 : i64, scratch_operands = 1 : i64, tpu.core_type = #tpu.core_type<tc>, window_params = [{transform_indices = @transform_0, window_bounds = array<i64: 8, 128>}, {transform_indices = @transform_1, window_bounds = array<i64: 128, 512>}, {pipeline_mode = #tpu.pipeline_mode<synchronous>, transform_indices = @transform_2, window_bounds = array<i64: 1, 512>}, {pipeline_mode = #tpu.pipeline_mode<synchronous>, transform_indices = @transform_3, window_bounds = array<i64: 512, 128>}, {pipeline_mode = #tpu.pipeline_mode<synchronous>, transform_indices = @transform_4, window_bounds = array<i64: 1, 128>}, {pipeline_mode = #tpu.pipeline_mode<synchronous>, transform_indices = @transform_5, window_bounds = array<i64: 8, 128>}]} {
    %c0_i32 = arith.constant 0 : i32
    %0 = arith.cmpi eq, %arg0, %c0_i32 : i32
    %1 = arith.extui %0 : i1 to i32
    %c0_i32_0 = arith.constant 0 : i32
    %2 = arith.cmpi ne, %1, %c0_i32_0 : i32
    scf.if %2 {
      %cst_10 = arith.constant 0.000000e+00 : f32
      %12 = vector.broadcast %cst_10 : f32 to vector<8x512xf32>
      %c0_11 = arith.constant 0 : index
      %c0_12 = arith.constant 0 : index
      %13 = vector.load %arg7[%c0_11, %c0_12] : memref<8x512xf32, #tpu.memory_space<vmem>>, vector<8x512xf32>
      tpu.vector_store %arg7[%c0_11, %c0_12], %12 {strides = array<i32>} : memref<8x512xf32, #tpu.memory_space<vmem>>, vector<8x512xf32>,
    } else {
    }
    %c0 = arith.constant 0 : index
    %c0_1 = arith.constant 0 : index
    %3 = vector.load %arg7[%c0, %c0_1] : memref<8x512xf32, #tpu.memory_space<vmem>>, vector<8x512xf32>
    %c0_2 = arith.constant 0 : index
    %c0_3 = arith.constant 0 : index
    %4 = vector.load %arg1[%c0_2, %c0_3] : memref<8x128xbf16, #tpu.memory_space<vmem>>, vector<8x128xbf16>
    %c0_4 = arith.constant 0 : index
    %c0_5 = arith.constant 0 : index
    %5 = vector.load %arg2[%c0_4, %c0_5] : memref<128x512xbf16, #tpu.memory_space<vmem>>, vector<128x512xbf16>
    %cst = arith.constant dense<0.000000e+00> : vector<8x512xf32>
    %6 = tpu.matmul %4, %5, %cst {dimension_numbers = #tpu.dot_dimension_numbers<[1], [0], [0], [1], [0, 0, 1, 1], [], []>} : vector<8x128xbf16>, vector<128x512xbf16>, vector<8x512xf32> -> vector<8x512xf32>
    %7 = arith.addf %3, %6 : vector<8x512xf32>
    %c0_6 = arith.constant 0 : index
    %c0_7 = arith.constant 0 : index
    %8 = vector.load %arg7[%c0_6, %c0_7] : memref<8x512xf32, #tpu.memory_space<vmem>>, vector<8x512xf32>
    tpu.vector_store %arg7[%c0_6, %c0_7], %7 {strides = array<i32>} : memref<8x512xf32, #tpu.memory_space<vmem>>, vector<8x512xf32>,
    %c0_i32_8 = arith.constant 0 : i32
    %9 = arith.cmpi eq, %arg0, %c0_i32_8 : i32
    %10 = arith.extui %9 : i1 to i32
    %c0_i32_9 = arith.constant 0 : i32
    %11 = arith.cmpi ne, %10, %c0_i32_9 : i32
    scf.if %11 {
      %c0_10 = arith.constant 0 : index
      %c0_11 = arith.constant 0 : index
      %12 = vector.load %arg7[%c0_10, %c0_11] : memref<8x512xf32, #tpu.memory_space<vmem>>, vector<8x512xf32>
      %c0_12 = arith.constant 0 : index
      %c0_13 = arith.constant 0 : index
      %13 = vector.load %arg3[%c0_12, %c0_13] : memref<1x512xf32, #tpu.memory_space<vmem>>, vector<1x512xf32>
      %14 = vector.broadcast %13 : vector<1x512xf32> to vector<8x512xf32>
      %15 = arith.addf %12, %14 : vector<8x512xf32>
      %cst_14 = arith.constant 0.000000e+00 : f32
      %16 = vector.broadcast %cst_14 : f32 to vector<8x512xf32>
      %17 = arith.maximumf %15, %16 : vector<8x512xf32>
      %18 = arith.truncf %17 : vector<8x512xf32> to vector<8x512xbf16>
      %c0_15 = arith.constant 0 : index
      %c0_16 = arith.constant 0 : index
      %19 = vector.load %arg4[%c0_15, %c0_16] : memref<512x128xbf16, #tpu.memory_space<vmem>>, vector<512x128xbf16>
      %cst_17 = arith.constant dense<0.000000e+00> : vector<8x128xf32>
      %20 = tpu.matmul %18, %19, %cst_17 {dimension_numbers = #tpu.dot_dimension_numbers<[1], [0], [0], [1], [0, 0, 1, 1], [], []>} : vector<8x512xbf16>, vector<512x128xbf16>, vector<8x128xf32> -> vector<8x128xf32>
      %c0_18 = arith.constant 0 : index
      %c0_19 = arith.constant 0 : index
      %21 = vector.load %arg5[%c0_18, %c0_19] : memref<1x128xf32, #tpu.memory_space<vmem>>, vector<1x128xf32>
      %22 = vector.broadcast %21 : vector<1x128xf32> to vector<8x128xf32>
      %23 = arith.addf %20, %22 : vector<8x128xf32>
      %c0_20 = arith.constant 0 : index
      %c0_21 = arith.constant 0 : index
      %24 = vector.load %arg6[%c0_20, %c0_21] : memref<8x128xf32, #tpu.memory_space<vmem>>, vector<8x128xf32>
      tpu.vector_store %arg6[%c0_20, %c0_21], %23 {strides = array<i32>} : memref<8x128xf32, #tpu.memory_space<vmem>>, vector<8x128xf32>,
    } else {
    }
    return
  }
  func.func @transform_0(%arg0: i32) -> (i32, i32) {
    %c0_i32 = arith.constant 0 : i32
    %c0_i32_0 = arith.constant 0 : i32
    return %c0_i32, %arg0 : i32, i32
  }
  func.func @transform_1(%arg0: i32) -> (i32, i32) {
    %c0_i32 = arith.constant 0 : i32
    %c0_i32_0 = arith.constant 0 : i32
    return %arg0, %c0_i32 : i32, i32
  }
  func.func @transform_2(%arg0: i32) -> (i32, i32) {
    %c0_i32 = arith.constant 0 : i32
    %c0_i32_0 = arith.constant 0 : i32
    %c0_i32_1 = arith.constant 0 : i32
    return %c0_i32, %c0_i32_0 : i32, i32
  }
  func.func @transform_3(%arg0: i32) -> (i32, i32) {
    %c0_i32 = arith.constant 0 : i32
    %c0_i32_0 = arith.constant 0 : i32
    %c0_i32_1 = arith.constant 0 : i32
    return %c0_i32, %c0_i32_0 : i32, i32
  }
  func.func @transform_4(%arg0: i32) -> (i32, i32) {
    %c0_i32 = arith.constant 0 : i32
    %c0_i32_0 = arith.constant 0 : i32
    %c0_i32_1 = arith.constant 0 : i32
    return %c0_i32, %c0_i32_0 : i32, i32
  }
  func.func @transform_5(%arg0: i32) -> (i32, i32) {
    %c0_i32 = arith.constant 0 : i32
    %c0_i32_0 = arith.constant 0 : i32
    %c0_i32_1 = arith.constant 0 : i32
    return %c0_i32, %c0_i32_0 : i32, i32
  }
}

</mosaic_0001>

<llo_original>
// kernel: dqn_forward.4
$region0: #{dqn_forward.4}
  #allocation0 [shape = 'u32[]', space=smem, size = 0x4, offset = 0x4, fixed_abs, tag = 'smem constant byte address 0x4 - core index']
  #allocation1 [shape = 'u32[144,128]{1,0:T(1,128)}', space=vmem, size = 0x12000, scoped, tag = 'internal scratch']
  #allocation2 [shape = 'f32[128,128]{1,0:T(8,128)}', space=vmem, size = 0x10000, scoped, tag = 'scratch operand']
  %s0 = inlined_call_operand.vmem [shape: bf16[128,256], index: 0, kind: input, shape index: {}]
  %s1 = inlined_call_operand.vmem [shape: bf16[256,128], index: 1, kind: input, shape index: {}]
  %s2 = inlined_call_operand.vmem [shape: f32[1,128], index: 2, kind: input, shape index: {}]
  %s3 = inlined_call_operand.vmem [shape: f32[128,128], index: 3, kind: output, shape index: {}]
  %s4 = sld [smem:[#allocation0]]
  $region30: #{dqn_forward.4} parent=0
    _
  %s6 = ssub.s32 1, %s4
  %s7 = scalar_select 0, %s6, %s4
  // Predicated region
  $region2: #{dqn_forward.4} parent=0 // pred_check
    _
  $region3: #{dqn_forward.4} parent=0 // pred_check_branch
    %9 = sbr.rel (0) target = $region5
  $region4: #{dqn_forward.4} parent=0 // pred_region
    _
  $region5: #{dqn_forward.4} parent=0 // pred_fallthru
    _
  // Predicated region
  $region6: #{dqn_forward.4} parent=0 // pred_check
    _
  $region7: #{dqn_forward.4} parent=0 // pred_check_branch
    %11 = sbr.rel (0) target = $region9
  $region8: #{dqn_forward.4} parent=0 // pred_region
    _
  $region9: #{dqn_forward.4} parent=0 // pred_fallthru
    _
  // Predicated region
  $region10: #{dqn_forward.4} parent=0 // pred_check
    _
  $region11: #{dqn_forward.4} parent=0 // pred_check_branch
    %13 = sbr.rel (0) target = $region13
  $region12: #{dqn_forward.4} parent=0 // pred_region
    _
  $region13: #{dqn_forward.4} parent=0 // pred_fallthru
    _
  %p15 = scmp.eq.s32.totalorder 0, 0
  // Predicated region
  $region14: #{dqn_forward.4} parent=0 // pred_check
    %p16 = pneg %p15
  $region15: #{dqn_forward.4} parent=0 // pred_check_branch
    %18 = sbr.rel (%p16) target = $region17
  $region16: #{dqn_forward.4} parent=0 // pred_region
    %19 = vst [vmem:[#allocation2] sm:$0xff] 0.0
    %20 = vst [vmem:[#allocation2 + $0x8] sm:$0xff] 0.0
    %21 = vst [vmem:[#allocation2 + $0x10] sm:$0xff] 0.0
    %22 = vst [vmem:[#allocation2 + $0x18] sm:$0xff] 0.0
    %23 = vst [vmem:[#allocation2 + $0x20] sm:$0xff] 0.0
    %24 = vst [vmem:[#allocation2 + $0x28] sm:$0xff] 0.0
    %25 = vst [vmem:[#allocation2 + $0x30] sm:$0xff] 0.0
    %26 = vst [vmem:[#allocation2 + $0x38] sm:$0xff] 0.0
    %27 = vst [vmem:[#allocation2 + $0x40] sm:$0xff] 0.0
    %28 = vst [vmem:[#allocation2 + $0x48] sm:$0xff] 0.0
    %29 = vst [vmem:[#allocation2 + $0x50] sm:$0xff] 0.0
    %30 = vst [vmem:[#allocation2 + $0x58] sm:$0xff] 0.0
    %31 = vst [vmem:[#allocation2 + $0x60] sm:$0xff] 0.0
    %32 = vst [vmem:[#allocation2 + $0x68] sm:$0xff] 0.0
    %33 = vst [vmem:[#allocation2 + $0x70] sm:$0xff] 0.0
    %34 = vst [vmem:[#allocation2 + $0x78] sm:$0xff] 0.0
  $region17: #{dqn_forward.4} parent=0 // pred_fallthru
    _
  %v35 = vld [vmem:[#allocation2] sm:$0xff]
  %v36 = vld [vmem:[#allocation2 + $0x8] sm:$0xff]
  %v37 = vld [vmem:[#allocation2 + $0x10] sm:$0xff]
  %v38 = vld [vmem:[#allocation2 + $0x18] sm:$0xff]
  %v39 = vld [vmem:[#allocation2 + $0x20] sm:$0xff]
  %v40 = vld [vmem:[#allocation2 + $0x28] sm:$0xff]
  %v41 = vld [vmem:[#allocation2 + $0x30] sm:$0xff]
  %v42 = vld [vmem:[#allocation2 + $0x38] sm:$0xff]
  %v43 = vld [vmem:[#allocation2 + $0x40] sm:$0xff]
  %v44 = vld [vmem:[#allocation2 + $0x48] sm:$0xff]
  %v45 = vld [vmem:[#allocation2 + $0x50] sm:$0xff]
  %v46 = vld [vmem:[#allocation2 + $0x58] sm:$0xff]
  %v47 = vld [vmem:[#allocation2 + $0x60] sm:$0xff]
  %v48 = vld [vmem:[#allocation2 + $0x68] sm:$0xff]
  %v49 = vld [vmem:[#allocation2 + $0x70] sm:$0xff]
  %v50 = vld [vmem:[#allocation2 + $0x78] sm:$0xff]
  %v51 = vld [vmem:[%s0] sm:$0xff]
  %v52 = vld [vmem:[%s0 + $0x8] sm:$0xff]
  %v53 = vld [vmem:[%s0 + $0x10] sm:$0xff]
  %v54 = vld [vmem:[%s0 + $0x18] sm:$0xff]
  %v55 = vld [vmem:[%s0 + $0x20] sm:$0xff]
  %v56 = vld [vmem:[%s0 + $0x28] sm:$0xff]
  %v57 = vld [vmem:[%s0 + $0x30] sm:$0xff]
  %v58 = vld [vmem:[%s0 + $0x38] sm:$0xff]
  %v59 = vld [vmem:[%s0 + $0x40] sm:$0xff]
  %v60 = vld [vmem:[%s0 + $0x48] sm:$0xff]
  %v61 = vld [vmem:[%s0 + $0x50] sm:$0xff]
  %v62 = vld [vmem:[%s0 + $0x58] sm:$0xff]
  %v63 = vld [vmem:[%s0 + $0x60] sm:$0xff]
  %v64 = vld [vmem:[%s0 + $0x68] sm:$0xff]
  %v65 = vld [vmem:[%s0 + $0x70] sm:$0xff]
  %v66 = vld [vmem:[%s0 + $0x78] sm:$0xff]
  %v67 = vld [vmem:[%s1] sm:$0xf]
  %v68 = vld [vmem:[%s1 + $0x4] sm:$0xf]
  %v69 = vld [vmem:[%s1 + $0x8] sm:$0xf]
  %v70 = vld [vmem:[%s1 + $0xc] sm:$0xf]
  %v71 = vld [vmem:[%s1 + $0x10] sm:$0xf]
  %v72 = vld [vmem:[%s1 + $0x14] sm:$0xf]
  %v73 = vld [vmem:[%s1 + $0x18] sm:$0xf]
  %v74 = vld [vmem:[%s1 + $0x1c] sm:$0xf]
  %v75 = vld [vmem:[%s1 + $0x20] sm:$0xf]
  %v76 = vld [vmem:[%s1 + $0x24] sm:$0xf]
  %v77 = vld [vmem:[%s1 + $0x28] sm:$0xf]
  %v78 = vld [vmem:[%s1 + $0x2c] sm:$0xf]
  %v79 = vld [vmem:[%s1 + $0x30] sm:$0xf]
  %v80 = vld [vmem:[%s1 + $0x34] sm:$0xf]
  %v81 = vld [vmem:[%s1 + $0x38] sm:$0xf]
  %v82 = vld [vmem:[%s1 + $0x3c] sm:$0xf]
  %v83 = vld [vmem:[%s1 + $0x40] sm:$0xf]
  %v84 = vld [vmem:[%s1 + $0x44] sm:$0xf]
  %v85 = vld [vmem:[%s1 + $0x48] sm:$0xf]
  %v86 = vld [vmem:[%s1 + $0x4c] sm:$0xf]
  %v87 = vld [vmem:[%s1 + $0x50] sm:$0xf]
  %v88 = vld [vmem:[%s1 + $0x54] sm:$0xf]
  %v89 = vld [vmem:[%s1 + $0x58] sm:$0xf]
  %v90 = vld [vmem:[%s1 + $0x5c] sm:$0xf]
  %v91 = vld [vmem:[%s1 + $0x60] sm:$0xf]
  %v92 = vld [vmem:[%s1 + $0x64] sm:$0xf]
  %v93 = vld [vmem:[%s1 + $0x68] sm:$0xf]
  %v94 = vld [vmem:[%s1 + $0x6c] sm:$0xf]
  %v95 = vld [vmem:[%s1 + $0x70] sm:$0xf]
  %v96 = vld [vmem:[%s1 + $0x74] sm:$0xf]
  %v97 = vld [vmem:[%s1 + $0x78] sm:$0xf]
  %v98 = vld [vmem:[%s1 + $0x7c] sm:$0xf]
  %v115 = vunpack.c.l.b16 %v51
  %v116 = vunpack.c.h.b16 %v51
  %v117 = vunpack.c.l.b16 %v52
  %v118 = vunpack.c.h.b16 %v52
  %v119 = vunpack.c.l.b16 %v53
  %v120 = vunpack.c.h.b16 %v53
  %v121 = vunpack.c.l.b16 %v54
  %v122 = vunpack.c.h.b16 %v54
  %v123 = vunpack.c.l.b16 %v55
  %v124 = vunpack.c.h.b16 %v55
  %v125 = vunpack.c.l.b16 %v56
  %v126 = vunpack.c.h.b16 %v56
  %v127 = vunpack.c.l.b16 %v57
  %v128 = vunpack.c.h.b16 %v57
  %v129 = vunpack.c.l.b16 %v58
  %v130 = vunpack.c.h.b16 %v58
  %v131 = vunpack.c.l.b16 %v59
  %v132 = vunpack.c.h.b16 %v59
  %v133 = vunpack.c.l.b16 %v60
  %v134 = vunpack.c.h.b16 %v60
  %v135 = vunpack.c.l.b16 %v61
  %v136 = vunpack.c.h.b16 %v61
  %v137 = vunpack.c.l.b16 %v62
  %v138 = vunpack.c.h.b16 %v62
  %v139 = vunpack.c.l.b16 %v63
  %v140 = vunpack.c.h.b16 %v63
  %v141 = vunpack.c.l.b16 %v64
  %v142 = vunpack.c.h.b16 %v64
  %v143 = vunpack.c.l.b16 %v65
  %v144 = vunpack.c.h.b16 %v65
  %v145 = vunpack.c.l.b16 %v66
  %v146 = vunpack.c.h.b16 %v66
  %v147 = vpack.c.b16 %v117, %v115
  %v148 = vpack.c.b16 %v118, %v116
  %v149 = vpack.c.b16 %v121, %v119
  %v150 = vpack.c.b16 %v122, %v120
  %v151 = vpack.c.b16 %v125, %v123
  %v152 = vpack.c.b16 %v126, %v124
  %v153 = vpack.c.b16 %v129, %v127
  %v154 = vpack.c.b16 %v130, %v128
  %v155 = vpack.c.b16 %v133, %v131
  %v156 = vpack.c.b16 %v134, %v132
  %v157 = vpack.c.b16 %v137, %v135
  %v158 = vpack.c.b16 %v138, %v136
  %v159 = vpack.c.b16 %v141, %v139
  %v160 = vpack.c.b16 %v142, %v140
  %v161 = vpack.c.b16 %v145, %v143
  %v162 = vpack.c.b16 %v146, %v144
  %v211 = vunpack.c.l.b16 %v67
  %v212 = vunpack.c.l.b16 %v68
  %v213 = vunpack.c.l.b16 %v69
  %v214 = vunpack.c.l.b16 %v70
  %v215 = vunpack.c.l.b16 %v71
  %v216 = vunpack.c.l.b16 %v72
  %v217 = vunpack.c.l.b16 %v73
  %v218 = vunpack.c.l.b16 %v74
  %v219 = vunpack.c.l.b16 %v75
  %v220 = vunpack.c.l.b16 %v76
  %v221 = vunpack.c.l.b16 %v77
  %v222 = vunpack.c.l.b16 %v78
  %v223 = vunpack.c.l.b16 %v79
  %v224 = vunpack.c.l.b16 %v80
  %v225 = vunpack.c.l.b16 %v81
  %v226 = vunpack.c.l.b16 %v82
  %v227 = vunpack.c.l.b16 %v83
  %v228 = vunpack.c.l.b16 %v84
  %v229 = vunpack.c.l.b16 %v85
  %v230 = vunpack.c.l.b16 %v86
  %v231 = vunpack.c.l.b16 %v87
  %v232 = vunpack.c.l.b16 %v88
  %v233 = vunpack.c.l.b16 %v89
  %v234 = vunpack.c.l.b16 %v90
  %v235 = vunpack.c.l.b16 %v91
  %v236 = vunpack.c.l.b16 %v92
  %v237 = vunpack.c.l.b16 %v93
  %v238 = vunpack.c.l.b16 %v94
  %v239 = vunpack.c.l.b16 %v95
  %v240 = vunpack.c.l.b16 %v96
  %v241 = vunpack.c.l.b16 %v97
  %v242 = vunpack.c.l.b16 %v98
  %v243 = vpack.c.b16 %v212, %v211
  %v244 = vpack.c.b16 %v214, %v213
  %v245 = vpack.c.b16 %v216, %v215
  %v246 = vpack.c.b16 %v218, %v217
  %v247 = vpack.c.b16 %v220, %v219
  %v248 = vpack.c.b16 %v222, %v221
  %v249 = vpack.c.b16 %v224, %v223
  %v250 = vpack.c.b16 %v226, %v225
  %v251 = vpack.c.b16 %v228, %v227
  %v252 = vpack.c.b16 %v230, %v229
  %v253 = vpack.c.b16 %v232, %v231
  %v254 = vpack.c.b16 %v234, %v233
  %v255 = vpack.c.b16 %v236, %v235
  %v256 = vpack.c.b16 %v238, %v237
  %v257 = vpack.c.b16 %v240, %v239
  %v258 = vpack.c.b16 %v242, %v241
  %275 = vmatprep.subr.bf16.mxu0 0
  %276 = vmatpush1.bf16.msra.mxu0 %v243
  %277 = vmatprep.subr.bf16.mxu0 0
  %278 = vmatpush1.bf16.msra.mxu0 %v244
  %279 = vmatprep.subr.bf16.mxu0 0
  %280 = vmatpush1.bf16.msra.mxu0 %v245
  %281 = vmatprep.subr.bf16.mxu0 0
  %282 = vmatpush1.bf16.msra.mxu0 %v246
  %283 = vmatprep.subr.bf16.mxu0 0
  %284 = vmatpush1.bf16.msra.mxu0 %v247
  %285 = vmatprep.subr.bf16.mxu0 0
  %286 = vmatpush1.bf16.msra.mxu0 %v248
  %287 = vmatprep.subr.bf16.mxu0 0
  %288 = vmatpush1.bf16.msra.mxu0 %v249
  %289 = vmatprep.subr.bf16.mxu0 0
  %290 = vmatpush1.bf16.msra.mxu0 %v250
  %291 = vmatprep.subr.bf16.mxu0 0
  %292 = vmatpush1.bf16.msra.mxu0 %v251
  %293 = vmatprep.subr.bf16.mxu0 0
  %294 = vmatpush1.bf16.msra.mxu0 %v252
  %295 = vmatprep.subr.bf16.mxu0 0
  %296 = vmatpush1.bf16.msra.mxu0 %v253
  %297 = vmatprep.subr.bf16.mxu0 0
  %298 = vmatpush1.bf16.msra.mxu0 %v254
  %299 = vmatprep.subr.bf16.mxu0 0
  %300 = vmatpush1.bf16.msra.mxu0 %v255
  %301 = vmatprep.subr.bf16.mxu0 0
  %302 = vmatpush1.bf16.msra.mxu0 %v256
  %303 = vmatprep.subr.bf16.mxu0 0
  %304 = vmatpush1.bf16.msra.mxu0 %v257
  %305 = vmatprep.subr.bf16.mxu0 0
  %306 = vmatpush1.bf16.msra.mxu0 %v258
  %307 = vmatprep.mubr.bf16.mxu0 %v148
  %308 = vmatmul.mubr.bf16.gmra.mrb[0].mxu0 %v147
  %v309 = vpop.f32.mrb[0].mxu0
  %v310 = vadd.f32 0.0, %v309
  %v311 = vpop.f32.mrb[0].mxu0
  %v312 = vpop.f32.mrb[0].mxu0
  %v313 = vadd.f32 0.0, %v312
  %v314 = vpop.f32.mrb[0].mxu0
  %315 = vmatprep.mubr.bf16.mxu0 %v150
  %316 = vmatmul.mubr.bf16.gmra.mrb[0].mxu0 %v149
  %v317 = vpop.f32.mrb[0].mxu0
  %v318 = vadd.f32 0.0, %v317
  %v319 = vpop.f32.mrb[0].mxu0
  %v320 = vpop.f32.mrb[0].mxu0
  %v321 = vadd.f32 0.0, %v320
  %v322 = vpop.f32.mrb[0].mxu0
  %323 = vmatprep.mubr.bf16.mxu0 %v152
  %324 = vmatmul.mubr.bf16.gmra.mrb[0].mxu0 %v151
  %v325 = vpop.f32.mrb[0].mxu0
  %v326 = vadd.f32 0.0, %v325
  %v327 = vpop.f32.mrb[0].mxu0
  %v328 = vpop.f32.mrb[0].mxu0
  %v329 = vadd.f32 0.0, %v328
  %v330 = vpop.f32.mrb[0].mxu0
  %331 = vmatprep.mubr.bf16.mxu0 %v154
  %332 = vmatmul.mubr.bf16.gmra.mrb[0].mxu0 %v153
  %v333 = vpop.f32.mrb[0].mxu0
  %v334 = vadd.f32 0.0, %v333
  %v335 = vpop.f32.mrb[0].mxu0
  %v336 = vpop.f32.mrb[0].mxu0
  %v337 = vadd.f32 0.0, %v336
  %v338 = vpop.f32.mrb[0].mxu0
  %339 = vmatprep.mubr.bf16.mxu0 %v156
  %340 = vmatmul.mubr.bf16.gmra.mrb[0].mxu0 %v155
  %v341 = vpop.f32.mrb[0].mxu0
  %v342 = vadd.f32 0.0, %v341
  %v343 = vpop.f32.mrb[0].mxu0
  %v344 = vpop.f32.mrb[0].mxu0
  %v345 = vadd.f32 0.0, %v344
  %v346 = vpop.f32.mrb[0].mxu0
  %347 = vmatprep.mubr.bf16.mxu0 %v158
  %348 = vmatmul.mubr.bf16.gmra.mrb[0].mxu0 %v157
  %v349 = vpop.f32.mrb[0].mxu0
  %v350 = vadd.f32 0.0, %v349
  %v351 = vpop.f32.mrb[0].mxu0
  %v352 = vpop.f32.mrb[0].mxu0
  %v353 = vadd.f32 0.0, %v352
  %v354 = vpop.f32.mrb[0].mxu0
  %355 = vmatprep.mubr.bf16.mxu0 %v160
  %356 = vmatmul.mubr.bf16.gmra.mrb[0].mxu0 %v159
  %v357 = vpop.f32.mrb[0].mxu0
  %v358 = vadd.f32 0.0, %v357
  %v359 = vpop.f32.mrb[0].mxu0
  %v360 = vpop.f32.mrb[0].mxu0
  %v361 = vadd.f32 0.0, %v360
  %v362 = vpop.f32.mrb[0].mxu0
  %363 = vmatprep.mubr.bf16.mxu0 %v162
  %364 = vmatmul.mubr.bf16.gmra.mrb[0].mxu0 %v161
  %v365 = vpop.f32.mrb[0].mxu0
  %v366 = vadd.f32 0.0, %v365
  %v367 = vpop.f32.mrb[0].mxu0
  %v368 = vpop.f32.mrb[0].mxu0
  %v369 = vadd.f32 0.0, %v368
  %v370 = vpop.f32.mrb[0].mxu0
  %371 = vdwg.mxu0
  %v372 = vadd.f32 %v35, %v310
  %v373 = vadd.f32 %v36, %v313
  %v374 = vadd.f32 %v37, %v318
  %v375 = vadd.f32 %v38, %v321
  %v376 = vadd.f32 %v39, %v326
  %v377 = vadd.f32 %v40, %v329
  %v378 = vadd.f32 %v41, %v334
  %v379 = vadd.f32 %v42, %v337
  %v380 = vadd.f32 %v43, %v342
  %v381 = vadd.f32 %v44, %v345
  %v382 = vadd.f32 %v45, %v350
  %v383 = vadd.f32 %v46, %v353
  %v384 = vadd.f32 %v47, %v358
  %v385 = vadd.f32 %v48, %v361
  %v386 = vadd.f32 %v49, %v366
  %v387 = vadd.f32 %v50, %v369
  %388 = vst [vmem:[#allocation2] sm:$0xff] %v372
  %389 = vst [vmem:[#allocation2 + $0x8] sm:$0xff] %v373
  %390 = vst [vmem:[#allocation2 + $0x10] sm:$0xff] %v374
  %391 = vst [vmem:[#allocation2 + $0x18] sm:$0xff] %v375
  %392 = vst [vmem:[#allocation2 + $0x20] sm:$0xff] %v376
  %393 = vst [vmem:[#allocation2 + $0x28] sm:$0xff] %v377
  %394 = vst [vmem:[#allocation2 + $0x30] sm:$0xff] %v378
  %395 = vst [vmem:[#allocation2 + $0x38] sm:$0xff] %v379
  %396 = vst [vmem:[#allocation2 + $0x40] sm:$0xff] %v380
  %397 = vst [vmem:[#allocation2 + $0x48] sm:$0xff] %v381
  %398 = vst [vmem:[#allocation2 + $0x50] sm:$0xff] %v382
  %399 = vst [vmem:[#allocation2 + $0x58] sm:$0xff] %v383
  %400 = vst [vmem:[#allocation2 + $0x60] sm:$0xff] %v384
  %401 = vst [vmem:[#allocation2 + $0x68] sm:$0xff] %v385
  %402 = vst [vmem:[#allocation2 + $0x70] sm:$0xff] %v386
  %403 = vst [vmem:[#allocation2 + $0x78] sm:$0xff] %v387
  // Predicated region
  $region18: #{dqn_forward.4} parent=0 // pred_check
    %p404 = pneg %p15
  $region19: #{dqn_forward.4} parent=0 // pred_check_branch
    %406 = sbr.rel (%p404) target = $region21
  $region20: #{dqn_forward.4} parent=0 // pred_region
    %v407 = vld [vmem:[#allocation2] sm:$0xff]
    %v408 = vld [vmem:[#allocation2 + $0x8] sm:$0xff]
    %v409 = vld [vmem:[#allocation2 + $0x10] sm:$0xff]
    %v410 = vld [vmem:[#allocation2 + $0x18] sm:$0xff]
    %v411 = vld [vmem:[#allocation2 + $0x20] sm:$0xff]
    %v412 = vld [vmem:[#allocation2 + $0x28] sm:$0xff]
    %v413 = vld [vmem:[#allocation2 + $0x30] sm:$0xff]
    %v414 = vld [vmem:[#allocation2 + $0x38] sm:$0xff]
    %v415 = vld [vmem:[#allocation2 + $0x40] sm:$0xff]
    %v416 = vld [vmem:[#allocation2 + $0x48] sm:$0xff]
    %v417 = vld [vmem:[#allocation2 + $0x50] sm:$0xff]
    %v418 = vld [vmem:[#allocation2 + $0x58] sm:$0xff]
    %v419 = vld [vmem:[#allocation2 + $0x60] sm:$0xff]
    %v420 = vld [vmem:[#allocation2 + $0x68] sm:$0xff]
    %v421 = vld [vmem:[#allocation2 + $0x70] sm:$0xff]
    %v422 = vld [vmem:[#allocation2 + $0x78] sm:$0xff]
    %v423 = vld [vmem:[%s2] sm:$0x1]
    %v425 = vlaneseq
    %v426 = vshrl.u32 %v425, 7
    %v427 = vsub.s32 0, %v426
    %v428 = vrot.slane %v423, %v427
    %v430 = vadd.f32 %v407, %v428
    %v431 = vadd.f32 %v408, %v428
    %v432 = vadd.f32 %v409, %v428
    %v433 = vadd.f32 %v410, %v428
    %v434 = vadd.f32 %v411, %v428
    %v435 = vadd.f32 %v412, %v428
    %v436 = vadd.f32 %v413, %v428
    %v437 = vadd.f32 %v414, %v428
    %v438 = vadd.f32 %v415, %v428
    %v439 = vadd.f32 %v416, %v428
    %v440 = vadd.f32 %v417, %v428
    %v441 = vadd.f32 %v418, %v428
    %v442 = vadd.f32 %v419, %v428
    %v443 = vadd.f32 %v420, %v428
    %v444 = vadd.f32 %v421, %v428
    %v445 = vadd.f32 %v422, %v428
    %v446 = vmax.f32 %v430, 0.0
    %v447 = vmax.f32 %v431, 0.0
    %v448 = vmax.f32 %v432, 0.0
    %v449 = vmax.f32 %v433, 0.0
    %v450 = vmax.f32 %v434, 0.0
    %v451 = vmax.f32 %v435, 0.0
    %v452 = vmax.f32 %v436, 0.0
    %v453 = vmax.f32 %v437, 0.0
    %v454 = vmax.f32 %v438, 0.0
    %v455 = vmax.f32 %v439, 0.0
    %v456 = vmax.f32 %v440, 0.0
    %v457 = vmax.f32 %v441, 0.0
    %v458 = vmax.f32 %v442, 0.0
    %v459 = vmax.f32 %v443, 0.0
    %v460 = vmax.f32 %v444, 0.0
    %v461 = vmax.f32 %v445, 0.0
    %462 = vst [vmem:[%s3] sm:$0xff] %v446
    %463 = vst [vmem:[%s3 + $0x8] sm:$0xff] %v447
    %464 = vst [vmem:[%s3 + $0x10] sm:$0xff] %v448
    %465 = vst [vmem:[%s3 + $0x18] sm:$0xff] %v449
    %466 = vst [vmem:[%s3 + $0x20] sm:$0xff] %v450
    %467 = vst [vmem:[%s3 + $0x28] sm:$0xff] %v451
    %468 = vst [vmem:[%s3 + $0x30] sm:$0xff] %v452
    %469 = vst [vmem:[%s3 + $0x38] sm:$0xff] %v453
    %470 = vst [vmem:[%s3 + $0x40] sm:$0xff] %v454
    %471 = vst [vmem:[%s3 + $0x48] sm:$0xff] %v455
    %472 = vst [vmem:[%s3 + $0x50] sm:$0xff] %v456
    %473 = vst [vmem:[%s3 + $0x58] sm:$0xff] %v457
    %474 = vst [vmem:[%s3 + $0x60] sm:$0xff] %v458
    %475 = vst [vmem:[%s3 + $0x68] sm:$0xff] %v459
    %476 = vst [vmem:[%s3 + $0x70] sm:$0xff] %v460
    %477 = vst [vmem:[%s3 + $0x78] sm:$0xff] %v461
  $region21: #{dqn_forward.4} parent=0 // pred_fallthru
    _
  // Predicated region
  $region22: #{dqn_forward.4} parent=0 // pred_check
    _
  $region23: #{dqn_forward.4} parent=0 // pred_check_branch
    %479 = sbr.rel (0) target = $region25
  $region24: #{dqn_forward.4} parent=0 // pred_region
    _
  $region25: #{dqn_forward.4} parent=0 // pred_fallthru
    _
  // Predicated region
  $region26: #{dqn_forward.4} parent=0 // pred_check
    _
  $region27: #{dqn_forward.4} parent=0 // pred_check_branch
    %481 = sbr.rel (0) target = $region29
  $region28: #{dqn_forward.4} parent=0 // pred_region
    _
  $region29: #{dqn_forward.4} parent=0 // pred_fallthru
    _

// kernel: dqn_forward.5
$region0: #{dqn_forward.5}
  #allocation0 [shape = 'u32[]', space=smem, size = 0x4, offset = 0x4, fixed_abs, tag = 'smem constant byte address 0x4 - core index']
  #allocation1 [shape = 'u32[144,128]{1,0:T(1,128)}', space=vmem, size = 0x12000, scoped, tag = 'internal scratch']
  #allocation2 [shape = 'f32[24,128]{1,0:T(8,128)}', space=vmem, size = 0x3000, scoped, tag = 'scratch operand']
  %s0 = inlined_call_operand.vmem [shape: bf16[24,512], index: 0, kind: input, shape index: {}]
  %s1 = inlined_call_operand.vmem [shape: bf16[512,128], index: 1, kind: input, shape index: {}]
  %s2 = inlined_call_operand.vmem [shape: f32[1,128], index: 2, kind: input, shape index: {}]
  %s3 = inlined_call_operand.vmem [shape: f32[24,128], index: 3, kind: output, shape index: {}]
  %s4 = sld [smem:[#allocation0]]
  $region30: #{dqn_forward.5} parent=0
    _
  %s6 = ssub.s32 1, %s4
  %s7 = scalar_select 0, %s6, %s4
  // Predicated region
  $region2: #{dqn_forward.5} parent=0 // pred_check
    _
  $region3: #{dqn_forward.5} parent=0 // pred_check_branch
    %9 = sbr.rel (0) target = $region5
  $region4: #{dqn_forward.5} parent=0 // pred_region
    _
  $region5: #{dqn_forward.5} parent=0 // pred_fallthru
    _
  // Predicated region
  $region6: #{dqn_forward.5} parent=0 // pred_check
    _
  $region7: #{dqn_forward.5} parent=0 // pred_check_branch
    %11 = sbr.rel (0) target = $region9
  $region8: #{dqn_forward.5} parent=0 // pred_region
    _
  $region9: #{dqn_forward.5} parent=0 // pred_fallthru
    _
  // Predicated region
  $region10: #{dqn_forward.5} parent=0 // pred_check
    _
  $region11: #{dqn_forward.5} parent=0 // pred_check_branch
    %13 = sbr.rel (0) target = $region13
  $region12: #{dqn_forward.5} parent=0 // pred_region
    _
  $region13: #{dqn_forward.5} parent=0 // pred_fallthru
    _
  %p15 = scmp.eq.s32.totalorder 0, 0
  // Predicated region
  $region14: #{dqn_forward.5} parent=0 // pred_check
    %p16 = pneg %p15
  $region15: #{dqn_forward.5} parent=0 // pred_check_branch
    %18 = sbr.rel (%p16) target = $region17
  $region16: #{dqn_forward.5} parent=0 // pred_region
    %19 = vst [vmem:[#allocation2] sm:$0xff] 0.0
    %20 = vst [vmem:[#allocation2 + $0x8] sm:$0xff] 0.0
    %21 = vst [vmem:[#allocation2 + $0x10] sm:$0xff] 0.0
  $region17: #{dqn_forward.5} parent=0 // pred_fallthru
    _
  %v22 = vld [vmem:[#allocation2] sm:$0xff]
  %v23 = vld [vmem:[#allocation2 + $0x8] sm:$0xff]
  %v24 = vld [vmem:[#allocation2 + $0x10] sm:$0xff]
  %v25 = vld [vmem:[%s0] sm:$0xff]
  %v26 = vld [vmem:[%s0 + $0x8] sm:$0xff]
  %v27 = vld [vmem:[%s0 + $0x10] sm:$0xff]
  %v28 = vld [vmem:[%s0 + $0x18] sm:$0xff]
  %v29 = vld [vmem:[%s0 + $0x20] sm:$0xff]
  %v30 = vld [vmem:[%s0 + $0x28] sm:$0xff]
  %v31 = vld [vmem:[%s1] sm:$0xf]
  %v32 = vld [vmem:[%s1 + $0x4] sm:$0xf]
  %v33 = vld [vmem:[%s1 + $0x8] sm:$0xf]
  %v34 = vld [vmem:[%s1 + $0xc] sm:$0xf]
  %v35 = vld [vmem:[%s1 + $0x10] sm:$0xf]
  %v36 = vld [vmem:[%s1 + $0x14] sm:$0xf]
  %v37 = vld [vmem:[%s1 + $0x18] sm:$0xf]
  %v38 = vld [vmem:[%s1 + $0x1c] sm:$0xf]
  %v39 = vld [vmem:[%s1 + $0x20] sm:$0xf]
  %v40 = vld [vmem:[%s1 + $0x24] sm:$0xf]
  %v41 = vld [vmem:[%s1 + $0x28] sm:$0xf]
  %v42 = vld [vmem:[%s1 + $0x2c] sm:$0xf]
  %v43 = vld [vmem:[%s1 + $0x30] sm:$0xf]
  %v44 = vld [vmem:[%s1 + $0x34] sm:$0xf]
  %v45 = vld [vmem:[%s1 + $0x38] sm:$0xf]
  %v46 = vld [vmem:[%s1 + $0x3c] sm:$0xf]
  %v47 = vld [vmem:[%s1 + $0x40] sm:$0xf]
  %v48 = vld [vmem:[%s1 + $0x44] sm:$0xf]
  %v49 = vld [vmem:[%s1 + $0x48] sm:$0xf]
  %v50 = vld [vmem:[%s1 + $0x4c] sm:$0xf]
  %v51 = vld [vmem:[%s1 + $0x50] sm:$0xf]
  %v52 = vld [vmem:[%s1 + $0x54] sm:$0xf]
  %v53 = vld [vmem:[%s1 + $0x58] sm:$0xf]
  %v54 = vld [vmem:[%s1 + $0x5c] sm:$0xf]
  %v55 = vld [vmem:[%s1 + $0x60] sm:$0xf]
  %v56 = vld [vmem:[%s1 + $0x64] sm:$0xf]
  %v57 = vld [vmem:[%s1 + $0x68] sm:$0xf]
  %v58 = vld [vmem:[%s1 + $0x6c] sm:$0xf]
  %v59 = vld [vmem:[%s1 + $0x70] sm:$0xf]
  %v60 = vld [vmem:[%s1 + $0x74] sm:$0xf]
  %v61 = vld [vmem:[%s1 + $0x78] sm:$0xf]
  %v62 = vld [vmem:[%s1 + $0x7c] sm:$0xf]
  %v63 = vld [vmem:[%s1 + $0x80] sm:$0xf]
  %v64 = vld [vmem:[%s1 + $0x84] sm:$0xf]
  %v65 = vld [vmem:[%s1 + $0x88] sm:$0xf]
  %v66 = vld [vmem:[%s1 + $0x8c] sm:$0xf]
  %v67 = vld [vmem:[%s1 + $0x90] sm:$0xf]
  %v68 = vld [vmem:[%s1 + $0x94] sm:$0xf]
  %v69 = vld [vmem:[%s1 + $0x98] sm:$0xf]
  %v70 = vld [vmem:[%s1 + $0x9c] sm:$0xf]
  %v71 = vld [vmem:[%s1 + $0xa0] sm:$0xf]
  %v72 = vld [vmem:[%s1 + $0xa4] sm:$0xf]
  %v73 = vld [vmem:[%s1 + $0xa8] sm:$0xf]
  %v74 = vld [vmem:[%s1 + $0xac] sm:$0xf]
  %v75 = vld [vmem:[%s1 + $0xb0] sm:$0xf]
  %v76 = vld [vmem:[%s1 + $0xb4] sm:$0xf]
  %v77 = vld [vmem:[%s1 + $0xb8] sm:$0xf]
  %v78 = vld [vmem:[%s1 + $0xbc] sm:$0xf]
  %v79 = vld [vmem:[%s1 + $0xc0] sm:$0xf]
  %v80 = vld [vmem:[%s1 + $0xc4] sm:$0xf]
  %v81 = vld [vmem:[%s1 + $0xc8] sm:$0xf]
  %v82 = vld [vmem:[%s1 + $0xcc] sm:$0xf]
  %v83 = vld [vmem:[%s1 + $0xd0] sm:$0xf]
  %v84 = vld [vmem:[%s1 + $0xd4] sm:$0xf]
  %v85 = vld [vmem:[%s1 + $0xd8] sm:$0xf]
  %v86 = vld [vmem:[%s1 + $0xdc] sm:$0xf]
  %v87 = vld [vmem:[%s1 + $0xe0] sm:$0xf]
  %v88 = vld [vmem:[%s1 + $0xe4] sm:$0xf]
  %v89 = vld [vmem:[%s1 + $0xe8] sm:$0xf]
  %v90 = vld [vmem:[%s1 + $0xec] sm:$0xf]
  %v91 = vld [vmem:[%s1 + $0xf0] sm:$0xf]
  %v92 = vld [vmem:[%s1 + $0xf4] sm:$0xf]
  %v93 = vld [vmem:[%s1 + $0xf8] sm:$0xf]
  %v94 = vld [vmem:[%s1 + $0xfc] sm:$0xf]
  %v101 = vunpack.c.l.b16 %v25
  %v102 = vunpack.c.h.b16 %v25
  %v103 = vunpack.c.l.b16 %v26
  %v104 = vunpack.c.h.b16 %v26
  %v105 = vunpack.c.l.b16 %v27
  %v106 = vunpack.c.h.b16 %v27
  %v107 = vunpack.c.l.b16 %v28
  %v108 = vunpack.c.h.b16 %v28
  %v109 = vunpack.c.l.b16 %v29
  %v110 = vunpack.c.h.b16 %v29
  %v111 = vunpack.c.l.b16 %v30
  %v112 = vunpack.c.h.b16 %v30
  %v113 = vpack.c.b16 %v105, %v101
  %v114 = vpack.c.b16 %v106, %v102
  %v115 = vpack.c.b16 %v107, %v103
  %v116 = vpack.c.b16 %v108, %v104
  %v117 = vpack.c.b16 %v109, %v109
  %v118 = vpack.c.b16 %v110, %v110
  %v119 = vpack.c.b16 %v111, %v111
  %v120 = vpack.c.b16 %v112, %v112
  %v193 = vunpack.c.l.b16 %v31
  %v194 = vunpack.c.l.b16 %v32
  %v195 = vunpack.c.l.b16 %v33
  %v196 = vunpack.c.l.b16 %v34
  %v197 = vunpack.c.l.b16 %v35
  %v198 = vunpack.c.l.b16 %v36
  %v199 = vunpack.c.l.b16 %v37
  %v200 = vunpack.c.l.b16 %v38
  %v201 = vunpack.c.l.b16 %v39
  %v202 = vunpack.c.l.b16 %v40
  %v203 = vunpack.c.l.b16 %v41
  %v204 = vunpack.c.l.b16 %v42
  %v205 = vunpack.c.l.b16 %v43
  %v206 = vunpack.c.l.b16 %v44
  %v207 = vunpack.c.l.b16 %v45
  %v208 = vunpack.c.l.b16 %v46
  %v209 = vunpack.c.l.b16 %v47
  %v210 = vunpack.c.l.b16 %v48
  %v211 = vunpack.c.l.b16 %v49
  %v212 = vunpack.c.l.b16 %v50
  %v213 = vunpack.c.l.b16 %v51
  %v214 = vunpack.c.l.b16 %v52
  %v215 = vunpack.c.l.b16 %v53
  %v216 = vunpack.c.l.b16 %v54
  %v217 = vunpack.c.l.b16 %v55
  %v218 = vunpack.c.l.b16 %v56
  %v219 = vunpack.c.l.b16 %v57
  %v220 = vunpack.c.l.b16 %v58
  %v221 = vunpack.c.l.b16 %v59
  %v222 = vunpack.c.l.b16 %v60
  %v223 = vunpack.c.l.b16 %v61
  %v224 = vunpack.c.l.b16 %v62
  %v225 = vunpack.c.l.b16 %v63
  %v226 = vunpack.c.l.b16 %v64
  %v227 = vunpack.c.l.b16 %v65
  %v228 = vunpack.c.l.b16 %v66
  %v229 = vunpack.c.l.b16 %v67
  %v230 = vunpack.c.l.b16 %v68
  %v231 = vunpack.c.l.b16 %v69
  %v232 = vunpack.c.l.b16 %v70
  %v233 = vunpack.c.l.b16 %v71
  %v234 = vunpack.c.l.b16 %v72
  %v235 = vunpack.c.l.b16 %v73
  %v236 = vunpack.c.l.b16 %v74
  %v237 = vunpack.c.l.b16 %v75
  %v238 = vunpack.c.l.b16 %v76
  %v239 = vunpack.c.l.b16 %v77
  %v240 = vunpack.c.l.b16 %v78
  %v241 = vunpack.c.l.b16 %v79
  %v242 = vunpack.c.l.b16 %v80
  %v243 = vunpack.c.l.b16 %v81
  %v244 = vunpack.c.l.b16 %v82
  %v245 = vunpack.c.l.b16 %v83
  %v246 = vunpack.c.l.b16 %v84
  %v247 = vunpack.c.l.b16 %v85
  %v248 = vunpack.c.l.b16 %v86
  %v249 = vunpack.c.l.b16 %v87
  %v250 = vunpack.c.l.b16 %v88
  %v251 = vunpack.c.l.b16 %v89
  %v252 = vunpack.c.l.b16 %v90
  %v253 = vunpack.c.l.b16 %v91
  %v254 = vunpack.c.l.b16 %v92
  %v255 = vunpack.c.l.b16 %v93
  %v256 = vunpack.c.l.b16 %v94
  %v257 = vpack.c.b16 %v194, %v193
  %v258 = vpack.c.b16 %v196, %v195
  %v259 = vpack.c.b16 %v198, %v197
  %v260 = vpack.c.b16 %v200, %v199
  %v261 = vpack.c.b16 %v202, %v201
  %v262 = vpack.c.b16 %v204, %v203
  %v263 = vpack.c.b16 %v206, %v205
  %v264 = vpack.c.b16 %v208, %v207
  %v265 = vpack.c.b16 %v210, %v209
  %v266 = vpack.c.b16 %v212, %v211
  %v267 = vpack.c.b16 %v214, %v213
  %v268 = vpack.c.b16 %v216, %v215
  %v269 = vpack.c.b16 %v218, %v217
  %v270 = vpack.c.b16 %v220, %v219
  %v271 = vpack.c.b16 %v222, %v221
  %v272 = vpack.c.b16 %v224, %v223
  %v273 = vpack.c.b16 %v226, %v225
  %v274 = vpack.c.b16 %v228, %v227
  %v275 = vpack.c.b16 %v230, %v229
  %v276 = vpack.c.b16 %v232, %v231
  %v277 = vpack.c.b16 %v234, %v233
  %v278 = vpack.c.b16 %v236, %v235
  %v279 = vpack.c.b16 %v238, %v237
  %v280 = vpack.c.b16 %v240, %v239
  %v281 = vpack.c.b16 %v242, %v241
  %v282 = vpack.c.b16 %v244, %v243
  %v283 = vpack.c.b16 %v246, %v245
  %v284 = vpack.c.b16 %v248, %v247
  %v285 = vpack.c.b16 %v250, %v249
  %v286 = vpack.c.b16 %v252, %v251
  %v287 = vpack.c.b16 %v254, %v253
  %v288 = vpack.c.b16 %v256, %v255
  %321 = vmatprep.subr.bf16.mxu0 0
  %322 = vmatpush1.bf16.msra.mxu0 %v257
  %323 = vmatprep.subr.bf16.mxu0 0
  %324 = vmatpush1.bf16.msra.mxu0 %v258
  %325 = vmatprep.subr.bf16.mxu0 0
  %326 = vmatpush1.bf16.msra.mxu0 %v259
  %327 = vmatprep.subr.bf16.mxu0 0
  %328 = vmatpush1.bf16.msra.mxu0 %v260
  %329 = vmatprep.subr.bf16.mxu0 0
  %330 = vmatpush1.bf16.msra.mxu0 %v261
  %331 = vmatprep.subr.bf16.mxu0 0
  %332 = vmatpush1.bf16.msra.mxu0 %v262
  %333 = vmatprep.subr.bf16.mxu0 0
  %334 = vmatpush1.bf16.msra.mxu0 %v263
  %335 = vmatprep.subr.bf16.mxu0 0
  %336 = vmatpush1.bf16.msra.mxu0 %v264
  %337 = vmatprep.subr.bf16.mxu0 0
  %338 = vmatpush1.bf16.msra.mxu0 %v265
  %339 = vmatprep.subr.bf16.mxu0 0
  %340 = vmatpush1.bf16.msra.mxu0 %v266
  %341 = vmatprep.subr.bf16.mxu0 0
  %342 = vmatpush1.bf16.msra.mxu0 %v267
  %343 = vmatprep.subr.bf16.mxu0 0
  %344 = vmatpush1.bf16.msra.mxu0 %v268
  %345 = vmatprep.subr.bf16.mxu0 0
  %346 = vmatpush1.bf16.msra.mxu0 %v269
  %347 = vmatprep.subr.bf16.mxu0 0
  %348 = vmatpush1.bf16.msra.mxu0 %v270
  %349 = vmatprep.subr.bf16.mxu0 0
  %350 = vmatpush1.bf16.msra.mxu0 %v271
  %351 = vmatprep.subr.bf16.mxu0 0
  %352 = vmatpush1.bf16.msra.mxu0 %v272
  %353 = vmatprep.mubr.bf16.mxu0 %v114
  %354 = vmatmul.mubr.bf16.gmra.mrb[0].mxu0 %v113
  %v355 = vpop.f32.mrb[0].mxu0
  %v356 = vadd.f32 0.0, %v355
  %v357 = vpop.f32.mrb[0].mxu0
  %v358 = vpop.f32.mrb[0].mxu0
  %v359 = vadd.f32 0.0, %v358
  %v360 = vpop.f32.mrb[0].mxu0
  %361 = vmatprep.mubr.bf16.mxu0 %v118
  %362 = vmatmul.mubr.bf16.gmra.mrb[0].mxu0 %v117
  %v363 = vpop.f32.mrb[0].mxu0
  %v364 = vadd.f32 0.0, %v363
  %v365 = vpop.f32.mrb[0].mxu0
  %v366 = vpop.f32.mrb[0].mxu0
  %v367 = vpop.f32.mrb[0].mxu0
  %368 = vdwg.mxu0
  %369 = vmatprep.subr.bf16.mxu0 0
  %370 = vmatpush1.bf16.msra.mxu0 %v273
  %371 = vmatprep.subr.bf16.mxu0 0
  %372 = vmatpush1.bf16.msra.mxu0 %v274
  %373 = vmatprep.subr.bf16.mxu0 0
  %374 = vmatpush1.bf16.msra.mxu0 %v275
  %375 = vmatprep.subr.bf16.mxu0 0
  %376 = vmatpush1.bf16.msra.mxu0 %v276
  %377 = vmatprep.subr.bf16.mxu0 0
  %378 = vmatpush1.bf16.msra.mxu0 %v277
  %379 = vmatprep.subr.bf16.mxu0 0
  %380 = vmatpush1.bf16.msra.mxu0 %v278
  %381 = vmatprep.subr.bf16.mxu0 0
  %382 = vmatpush1.bf16.msra.mxu0 %v279
  %383 = vmatprep.subr.bf16.mxu0 0
  %384 = vmatpush1.bf16.msra.mxu0 %v280
  %385 = vmatprep.subr.bf16.mxu0 0
  %386 = vmatpush1.bf16.msra.mxu0 %v281
  %387 = vmatprep.subr.bf16.mxu0 0
  %388 = vmatpush1.bf16.msra.mxu0 %v282
  %389 = vmatprep.subr.bf16.mxu0 0
  %390 = vmatpush1.bf16.msra.mxu0 %v283
  %391 = vmatprep.subr.bf16.mxu0 0
  %392 = vmatpush1.bf16.msra.mxu0 %v284
  %393 = vmatprep.subr.bf16.mxu0 0
  %394 = vmatpush1.bf16.msra.mxu0 %v285
  %395 = vmatprep.subr.bf16.mxu0 0
  %396 = vmatpush1.bf16.msra.mxu0 %v286
  %397 = vmatprep.subr.bf16.mxu0 0
  %398 = vmatpush1.bf16.msra.mxu0 %v287
  %399 = vmatprep.subr.bf16.mxu0 0
  %400 = vmatpush1.bf16.msra.mxu0 %v288
  %401 = vmatprep.mubr.bf16.mxu0 %v116
  %402 = vmatmul.mubr.bf16.gmra.mrb[0].mxu0 %v115
  %v403 = vpop.f32.mrb[0].mxu0
  %v404 = vadd.f32 %v356, %v403
  %v405 = vpop.f32.mrb[0].mxu0
  %v406 = vpop.f32.mrb[0].mxu0
  %v407 = vadd.f32 %v359, %v406
  %v408 = vpop.f32.mrb[0].mxu0
  %409 = vmatprep.mubr.bf16.mxu0 %v120
  %410 = vmatmul.mubr.bf16.gmra.mrb[0].mxu0 %v119
  %v411 = vpop.f32.mrb[0].mxu0
  %v412 = vadd.f32 %v364, %v411
  %v413 = vpop.f32.mrb[0].mxu0
  %v414 = vpop.f32.mrb[0].mxu0
  %v415 = vpop.f32.mrb[0].mxu0
  %416 = vdwg.mxu0
  %v417 = vadd.f32 %v22, %v404
  %v418 = vadd.f32 %v23, %v407
  %v419 = vadd.f32 %v24, %v412
  %420 = vst [vmem:[#allocation2] sm:$0xff] %v417
  %421 = vst [vmem:[#allocation2 + $0x8] sm:$0xff] %v418
  %422 = vst [vmem:[#allocation2 + $0x10] sm:$0xff] %v419
  // Predicated region
  $region18: #{dqn_forward.5} parent=0 // pred_check
    %p423 = pneg %p15
  $region19: #{dqn_forward.5} parent=0 // pred_check_branch
    %425 = sbr.rel (%p423) target = $region21
  $region20: #{dqn_forward.5} parent=0 // pred_region
    %v426 = vld [vmem:[#allocation2] sm:$0xff]
    %v427 = vld [vmem:[#allocation2 + $0x8] sm:$0xff]
    %v428 = vld [vmem:[#allocation2 + $0x10] sm:$0xff]
    %v429 = vld [vmem:[%s2] sm:$0x1]
    %v431 = vlaneseq
    %v432 = vshrl.u32 %v431, 7
    %v433 = vsub.s32 0, %v432
    %v434 = vrot.slane %v429, %v433
    %v436 = vadd.f32 %v426, %v434
    %v437 = vadd.f32 %v427, %v434
    %v438 = vadd.f32 %v428, %v434
    %v439 = vmax.f32 %v436, 0.0
    %v440 = vmax.f32 %v437, 0.0
    %v441 = vmax.f32 %v438, 0.0
    %442 = vst [vmem:[%s3] sm:$0xff] %v439
    %443 = vst [vmem:[%s3 + $0x8] sm:$0xff] %v440
    %444 = vst [vmem:[%s3 + $0x10] sm:$0xff] %v441
  $region21: #{dqn_forward.5} parent=0 // pred_fallthru
    _
  // Predicated region
  $region22: #{dqn_forward.5} parent=0 // pred_check
    _
  $region23: #{dqn_forward.5} parent=0 // pred_check_branch
    %446 = sbr.rel (0) target = $region25
  $region24: #{dqn_forward.5} parent=0 // pred_region
    _
  $region25: #{dqn_forward.5} parent=0 // pred_fallthru
    _
  // Predicated region
  $region26: #{dqn_forward.5} parent=0 // pred_check
    _
  $region27: #{dqn_forward.5} parent=0 // pred_check_branch
    %448 = sbr.rel (0) target = $region29
  $region28: #{dqn_forward.5} parent=0 // pred_region
    _
  $region29: #{dqn_forward.5} parent=0 // pred_fallthru
    _

// kernel: dqn_forward.6
$region0: #{dqn_forward.6}
  #allocation0 [shape = 'u32[]', space=smem, size = 0x4, offset = 0x4, fixed_abs, tag = 'smem constant byte address 0x4 - core index']
  #allocation1 [shape = 'u32[144,128]{1,0:T(1,128)}', space=vmem, size = 0x12000, scoped, tag = 'internal scratch']
  #allocation2 [shape = 'f32[8,128]{1,0:T(8,128)}', space=vmem, size = 0x1000, scoped, tag = 'scratch operand']
  %s0 = inlined_call_operand.vmem [shape: bf16[8,640], index: 0, kind: input, shape index: {}]
  %s1 = inlined_call_operand.vmem [shape: bf16[640,128], index: 1, kind: input, shape index: {}]
  %s2 = inlined_call_operand.vmem [shape: f32[1,128], index: 2, kind: input, shape index: {}]
  %s3 = inlined_call_operand.vmem [shape: f32[8,128], index: 3, kind: output, shape index: {}]
  %s4 = sld [smem:[#allocation0]]
  $region30: #{dqn_forward.6} parent=0
    _
  %s6 = ssub.s32 1, %s4
  %s7 = scalar_select 0, %s6, %s4
  // Predicated region
  $region2: #{dqn_forward.6} parent=0 // pred_check
    _
  $region3: #{dqn_forward.6} parent=0 // pred_check_branch
    %9 = sbr.rel (0) target = $region5
  $region4: #{dqn_forward.6} parent=0 // pred_region
    _
  $region5: #{dqn_forward.6} parent=0 // pred_fallthru
    _
  // Predicated region
  $region6: #{dqn_forward.6} parent=0 // pred_check
    _
  $region7: #{dqn_forward.6} parent=0 // pred_check_branch
    %11 = sbr.rel (0) target = $region9
  $region8: #{dqn_forward.6} parent=0 // pred_region
    _
  $region9: #{dqn_forward.6} parent=0 // pred_fallthru
    _
  // Predicated region
  $region10: #{dqn_forward.6} parent=0 // pred_check
    _
  $region11: #{dqn_forward.6} parent=0 // pred_check_branch
    %13 = sbr.rel (0) target = $region13
  $region12: #{dqn_forward.6} parent=0 // pred_region
    _
  $region13: #{dqn_forward.6} parent=0 // pred_fallthru
    _
  %p15 = scmp.eq.s32.totalorder 0, 0
  // Predicated region
  $region14: #{dqn_forward.6} parent=0 // pred_check
    %p16 = pneg %p15
  $region15: #{dqn_forward.6} parent=0 // pred_check_branch
    %18 = sbr.rel (%p16) target = $region17
  $region16: #{dqn_forward.6} parent=0 // pred_region
    %19 = vst [vmem:[#allocation2] sm:$0xff] 0.0
  $region17: #{dqn_forward.6} parent=0 // pred_fallthru
    _
  %v20 = vld [vmem:[#allocation2] sm:$0xff]
  %v21 = vld [vmem:[%s0] sm:$0xff]
  %v22 = vld [vmem:[%s0 + $0x8] sm:$0xff]
  %v23 = vld [vmem:[%s0 + $0x10] sm:$0xf]
  %v24 = vld [vmem:[%s1] sm:$0xf]
  %v25 = vld [vmem:[%s1 + $0x4] sm:$0xf]
  %v26 = vld [vmem:[%s1 + $0x8] sm:$0xf]
  %v27 = vld [vmem:[%s1 + $0xc] sm:$0xf]
  %v28 = vld [vmem:[%s1 + $0x10] sm:$0xf]
  %v29 = vld [vmem:[%s1 + $0x14] sm:$0xf]
  %v30 = vld [vmem:[%s1 + $0x18] sm:$0xf]
  %v31 = vld [vmem:[%s1 + $0x1c] sm:$0xf]
  %v32 = vld [vmem:[%s1 + $0x20] sm:$0xf]
  %v33 = vld [vmem:[%s1 + $0x24] sm:$0xf]
  %v34 = vld [vmem:[%s1 + $0x28] sm:$0xf]
  %v35 = vld [vmem:[%s1 + $0x2c] sm:$0xf]
  %v36 = vld [vmem:[%s1 + $0x30] sm:$0xf]
  %v37 = vld [vmem:[%s1 + $0x34] sm:$0xf]
  %v38 = vld [vmem:[%s1 + $0x38] sm:$0xf]
  %v39 = vld [vmem:[%s1 + $0x3c] sm:$0xf]
  %v40 = vld [vmem:[%s1 + $0x40] sm:$0xf]
  %v41 = vld [vmem:[%s1 + $0x44] sm:$0xf]
  %v42 = vld [vmem:[%s1 + $0x48] sm:$0xf]
  %v43 = vld [vmem:[%s1 + $0x4c] sm:$0xf]
  %v44 = vld [vmem:[%s1 + $0x50] sm:$0xf]
  %v45 = vld [vmem:[%s1 + $0x54] sm:$0xf]
  %v46 = vld [vmem:[%s1 + $0x58] sm:$0xf]
  %v47 = vld [vmem:[%s1 + $0x5c] sm:$0xf]
  %v48 = vld [vmem:[%s1 + $0x60] sm:$0xf]
  %v49 = vld [vmem:[%s1 + $0x64] sm:$0xf]
  %v50 = vld [vmem:[%s1 + $0x68] sm:$0xf]
  %v51 = vld [vmem:[%s1 + $0x6c] sm:$0xf]
  %v52 = vld [vmem:[%s1 + $0x70] sm:$0xf]
  %v53 = vld [vmem:[%s1 + $0x74] sm:$0xf]
  %v54 = vld [vmem:[%s1 + $0x78] sm:$0xf]
  %v55 = vld [vmem:[%s1 + $0x7c] sm:$0xf]
  %v56 = vld [vmem:[%s1 + $0x80] sm:$0xf]
  %v57 = vld [vmem:[%s1 + $0x84] sm:$0xf]
  %v58 = vld [vmem:[%s1 + $0x88] sm:$0xf]
  %v59 = vld [vmem:[%s1 + $0x8c] sm:$0xf]
  %v60 = vld [vmem:[%s1 + $0x90] sm:$0xf]
  %v61 = vld [vmem:[%s1 + $0x94] sm:$0xf]
  %v62 = vld [vmem:[%s1 + $0x98] sm:$0xf]
  %v63 = vld [vmem:[%s1 + $0x9c] sm:$0xf]
  %v64 = vld [vmem:[%s1 + $0xa0] sm:$0xf]
  %v65 = vld [vmem:[%s1 + $0xa4] sm:$0xf]
  %v66 = vld [vmem:[%s1 + $0xa8] sm:$0xf]
  %v67 = vld [vmem:[%s1 + $0xac] sm:$0xf]
  %v68 = vld [vmem:[%s1 + $0xb0] sm:$0xf]
  %v69 = vld [vmem:[%s1 + $0xb4] sm:$0xf]
  %v70 = vld [vmem:[%s1 + $0xb8] sm:$0xf]
  %v71 = vld [vmem:[%s1 + $0xbc] sm:$0xf]
  %v72 = vld [vmem:[%s1 + $0xc0] sm:$0xf]
  %v73 = vld [vmem:[%s1 + $0xc4] sm:$0xf]
  %v74 = vld [vmem:[%s1 + $0xc8] sm:$0xf]
  %v75 = vld [vmem:[%s1 + $0xcc] sm:$0xf]
  %v76 = vld [vmem:[%s1 + $0xd0] sm:$0xf]
  %v77 = vld [vmem:[%s1 + $0xd4] sm:$0xf]
  %v78 = vld [vmem:[%s1 + $0xd8] sm:$0xf]
  %v79 = vld [vmem:[%s1 + $0xdc] sm:$0xf]
  %v80 = vld [vmem:[%s1 + $0xe0] sm:$0xf]
  %v81 = vld [vmem:[%s1 + $0xe4] sm:$0xf]
  %v82 = vld [vmem:[%s1 + $0xe8] sm:$0xf]
  %v83 = vld [vmem:[%s1 + $0xec] sm:$0xf]
  %v84 = vld [vmem:[%s1 + $0xf0] sm:$0xf]
  %v85 = vld [vmem:[%s1 + $0xf4] sm:$0xf]
  %v86 = vld [vmem:[%s1 + $0xf8] sm:$0xf]
  %v87 = vld [vmem:[%s1 + $0xfc] sm:$0xf]
  %v88 = vld [vmem:[%s1 + $0x100] sm:$0xf]
  %v89 = vld [vmem:[%s1 + $0x104] sm:$0xf]
  %v90 = vld [vmem:[%s1 + $0x108] sm:$0xf]
  %v91 = vld [vmem:[%s1 + $0x10c] sm:$0xf]
  %v92 = vld [vmem:[%s1 + $0x110] sm:$0xf]
  %v93 = vld [vmem:[%s1 + $0x114] sm:$0xf]
  %v94 = vld [vmem:[%s1 + $0x118] sm:$0xf]
  %v95 = vld [vmem:[%s1 + $0x11c] sm:$0xf]
  %v96 = vld [vmem:[%s1 + $0x120] sm:$0xf]
  %v97 = vld [vmem:[%s1 + $0x124] sm:$0xf]
  %v98 = vld [vmem:[%s1 + $0x128] sm:$0xf]
  %v99 = vld [vmem:[%s1 + $0x12c] sm:$0xf]
  %v100 = vld [vmem:[%s1 + $0x130] sm:$0xf]
  %v101 = vld [vmem:[%s1 + $0x134] sm:$0xf]
  %v102 = vld [vmem:[%s1 + $0x138] sm:$0xf]
  %v103 = vld [vmem:[%s1 + $0x13c] sm:$0xf]
  %v107 = vunpack.c.l.b16 %v21
  %v108 = vunpack.c.h.b16 %v21
  %v109 = vunpack.c.l.b16 %v22
  %v110 = vunpack.c.h.b16 %v22
  %v111 = vunpack.c.l.b16 %v23
  %v112 = vpack.c.b16 %v107, %v107
  %v113 = vpack.c.b16 %v108, %v108
  %v114 = vpack.c.b16 %v109, %v109
  %v115 = vpack.c.b16 %v110, %v110
  %v116 = vpack.c.b16 %v111, %v111
  %v202 = vunpack.c.l.b16 %v24
  %v203 = vunpack.c.l.b16 %v25
  %v204 = vunpack.c.l.b16 %v26
  %v205 = vunpack.c.l.b16 %v27
  %v206 = vunpack.c.l.b16 %v28
  %v207 = vunpack.c.l.b16 %v29
  %v208 = vunpack.c.l.b16 %v30
  %v209 = vunpack.c.l.b16 %v31
  %v210 = vunpack.c.l.b16 %v32
  %v211 = vunpack.c.l.b16 %v33
  %v212 = vunpack.c.l.b16 %v34
  %v213 = vunpack.c.l.b16 %v35
  %v214 = vunpack.c.l.b16 %v36
  %v215 = vunpack.c.l.b16 %v37
  %v216 = vunpack.c.l.b16 %v38
  %v217 = vunpack.c.l.b16 %v39
  %v218 = vunpack.c.l.b16 %v40
  %v219 = vunpack.c.l.b16 %v41
  %v220 = vunpack.c.l.b16 %v42
  %v221 = vunpack.c.l.b16 %v43
  %v222 = vunpack.c.l.b16 %v44
  %v223 = vunpack.c.l.b16 %v45
  %v224 = vunpack.c.l.b16 %v46
  %v225 = vunpack.c.l.b16 %v47
  %v226 = vunpack.c.l.b16 %v48
  %v227 = vunpack.c.l.b16 %v49
  %v228 = vunpack.c.l.b16 %v50
  %v229 = vunpack.c.l.b16 %v51
  %v230 = vunpack.c.l.b16 %v52
  %v231 = vunpack.c.l.b16 %v53
  %v232 = vunpack.c.l.b16 %v54
  %v233 = vunpack.c.l.b16 %v55
  %v234 = vunpack.c.l.b16 %v56
  %v235 = vunpack.c.l.b16 %v57
  %v236 = vunpack.c.l.b16 %v58
  %v237 = vunpack.c.l.b16 %v59
  %v238 = vunpack.c.l.b16 %v60
  %v239 = vunpack.c.l.b16 %v61
  %v240 = vunpack.c.l.b16 %v62
  %v241 = vunpack.c.l.b16 %v63
  %v242 = vunpack.c.l.b16 %v64
  %v243 = vunpack.c.l.b16 %v65
  %v244 = vunpack.c.l.b16 %v66
  %v245 = vunpack.c.l.b16 %v67
  %v246 = vunpack.c.l.b16 %v68
  %v247 = vunpack.c.l.b16 %v69
  %v248 = vunpack.c.l.b16 %v70
  %v249 = vunpack.c.l.b16 %v71
  %v250 = vunpack.c.l.b16 %v72
  %v251 = vunpack.c.l.b16 %v73
  %v252 = vunpack.c.l.b16 %v74
  %v253 = vunpack.c.l.b16 %v75
  %v254 = vunpack.c.l.b16 %v76
  %v255 = vunpack.c.l.b16 %v77
  %v256 = vunpack.c.l.b16 %v78
  %v257 = vunpack.c.l.b16 %v79
  %v258 = vunpack.c.l.b16 %v80
  %v259 = vunpack.c.l.b16 %v81
  %v260 = vunpack.c.l.b16 %v82
  %v261 = vunpack.c.l.b16 %v83
  %v262 = vunpack.c.l.b16 %v84
  %v263 = vunpack.c.l.b16 %v85
  %v264 = vunpack.c.l.b16 %v86
  %v265 = vunpack.c.l.b16 %v87
  %v266 = vunpack.c.l.b16 %v88
  %v267 = vunpack.c.l.b16 %v89
  %v268 = vunpack.c.l.b16 %v90
  %v269 = vunpack.c.l.b16 %v91
  %v270 = vunpack.c.l.b16 %v92
  %v271 = vunpack.c.l.b16 %v93
  %v272 = vunpack.c.l.b16 %v94
  %v273 = vunpack.c.l.b16 %v95
  %v274 = vunpack.c.l.b16 %v96
  %v275 = vunpack.c.l.b16 %v97
  %v276 = vunpack.c.l.b16 %v98
  %v277 = vunpack.c.l.b16 %v99
  %v278 = vunpack.c.l.b16 %v100
  %v279 = vunpack.c.l.b16 %v101
  %v280 = vunpack.c.l.b16 %v102
  %v281 = vunpack.c.l.b16 %v103
  %v282 = vpack.c.b16 %v203, %v202
  %v283 = vpack.c.b16 %v205, %v204
  %v284 = vpack.c.b16 %v207, %v206
  %v285 = vpack.c.b16 %v209, %v208
  %v286 = vpack.c.b16 %v211, %v210
  %v287 = vpack.c.b16 %v213, %v212
  %v288 = vpack.c.b16 %v215, %v214
  %v289 = vpack.c.b16 %v217, %v216
  %v290 = vpack.c.b16 %v219, %v218
  %v291 = vpack.c.b16 %v221, %v220
  %v292 = vpack.c.b16 %v223, %v222
  %v293 = vpack.c.b16 %v225, %v224
  %v294 = vpack.c.b16 %v227, %v226
  %v295 = vpack.c.b16 %v229, %v228
  %v296 = vpack.c.b16 %v231, %v230
  %v297 = vpack.c.b16 %v233, %v232
  %v298 = vpack.c.b16 %v235, %v234
  %v299 = vpack.c.b16 %v237, %v236
  %v300 = vpack.c.b16 %v239, %v238
  %v301 = vpack.c.b16 %v241, %v240
  %v302 = vpack.c.b16 %v243, %v242
  %v303 = vpack.c.b16 %v245, %v244
  %v304 = vpack.c.b16 %v247, %v246
  %v305 = vpack.c.b16 %v249, %v248
  %v306 = vpack.c.b16 %v251, %v250
  %v307 = vpack.c.b16 %v253, %v252
  %v308 = vpack.c.b16 %v255, %v254
  %v309 = vpack.c.b16 %v257, %v256
  %v310 = vpack.c.b16 %v259, %v258
  %v311 = vpack.c.b16 %v261, %v260
  %v312 = vpack.c.b16 %v263, %v262
  %v313 = vpack.c.b16 %v265, %v264
  %v314 = vpack.c.b16 %v267, %v266
  %v315 = vpack.c.b16 %v269, %v268
  %v316 = vpack.c.b16 %v271, %v270
  %v317 = vpack.c.b16 %v273, %v272
  %v318 = vpack.c.b16 %v275, %v274
  %v319 = vpack.c.b16 %v277, %v276
  %v320 = vpack.c.b16 %v279, %v278
  %v321 = vpack.c.b16 %v281, %v280
  %362 = vmatprep.subr.bf16.mxu0 0
  %363 = vmatpush1.bf16.msra.mxu0 %v282
  %364 = vmatprep.subr.bf16.mxu0 0
  %365 = vmatpush1.bf16.msra.mxu0 %v283
  %366 = vmatprep.subr.bf16.mxu0 0
  %367 = vmatpush1.bf16.msra.mxu0 %v284
  %368 = vmatprep.subr.bf16.mxu0 0
  %369 = vmatpush1.bf16.msra.mxu0 %v285
  %370 = vmatprep.subr.bf16.mxu0 0
  %371 = vmatpush1.bf16.msra.mxu0 %v286
  %372 = vmatprep.subr.bf16.mxu0 0
  %373 = vmatpush1.bf16.msra.mxu0 %v287
  %374 = vmatprep.subr.bf16.mxu0 0
  %375 = vmatpush1.bf16.msra.mxu0 %v288
  %376 = vmatprep.subr.bf16.mxu0 0
  %377 = vmatpush1.bf16.msra.mxu0 %v289
  %378 = vmatprep.subr.bf16.mxu0 0
  %379 = vmatpush1.bf16.msra.mxu0 %v290
  %380 = vmatprep.subr.bf16.mxu0 0
  %381 = vmatpush1.bf16.msra.mxu0 %v291
  %382 = vmatprep.subr.bf16.mxu0 0
  %383 = vmatpush1.bf16.msra.mxu0 %v292
  %384 = vmatprep.subr.bf16.mxu0 0
  %385 = vmatpush1.bf16.msra.mxu0 %v293
  %386 = vmatprep.subr.bf16.mxu0 0
  %387 = vmatpush1.bf16.msra.mxu0 %v294
  %388 = vmatprep.subr.bf16.mxu0 0
  %389 = vmatpush1.bf16.msra.mxu0 %v295
  %390 = vmatprep.subr.bf16.mxu0 0
  %391 = vmatpush1.bf16.msra.mxu0 %v296
  %392 = vmatprep.subr.bf16.mxu0 0
  %393 = vmatpush1.bf16.msra.mxu0 %v297
  %394 = vmatprep.mubr.bf16.mxu0 %v113
  %395 = vmatmul.mubr.bf16.gmra.mrb[0].mxu0 %v112
  %v396 = vpop.f32.mrb[0].mxu0
  %v397 = vadd.f32 0.0, %v396
  %v398 = vpop.f32.mrb[0].mxu0
  %v399 = vpop.f32.mrb[0].mxu0
  %v400 = vpop.f32.mrb[0].mxu0
  %401 = vdwg.mxu0
  %402 = vmatprep.subr.bf16.mxu0 0
  %403 = vmatpush1.bf16.msra.mxu0 %v298
  %404 = vmatprep.subr.bf16.mxu0 0
  %405 = vmatpush1.bf16.msra.mxu0 %v299
  %406 = vmatprep.subr.bf16.mxu0 0
  %407 = vmatpush1.bf16.msra.mxu0 %v300
  %408 = vmatprep.subr.bf16.mxu0 0
  %409 = vmatpush1.bf16.msra.mxu0 %v301
  %410 = vmatprep.subr.bf16.mxu0 0
  %411 = vmatpush1.bf16.msra.mxu0 %v302
  %412 = vmatprep.subr.bf16.mxu0 0
  %413 = vmatpush1.bf16.msra.mxu0 %v303
  %414 = vmatprep.subr.bf16.mxu0 0
  %415 = vmatpush1.bf16.msra.mxu0 %v304
  %416 = vmatprep.subr.bf16.mxu0 0
  %417 = vmatpush1.bf16.msra.mxu0 %v305
  %418 = vmatprep.subr.bf16.mxu0 0
  %419 = vmatpush1.bf16.msra.mxu0 %v306
  %420 = vmatprep.subr.bf16.mxu0 0
  %421 = vmatpush1.bf16.msra.mxu0 %v307
  %422 = vmatprep.subr.bf16.mxu0 0
  %423 = vmatpush1.bf16.msra.mxu0 %v308
  %424 = vmatprep.subr.bf16.mxu0 0
  %425 = vmatpush1.bf16.msra.mxu0 %v309
  %426 = vmatprep.subr.bf16.mxu0 0
  %427 = vmatpush1.bf16.msra.mxu0 %v310
  %428 = vmatprep.subr.bf16.mxu0 0
  %429 = vmatpush1.bf16.msra.mxu0 %v311
  %430 = vmatprep.subr.bf16.mxu0 0
  %431 = vmatpush1.bf16.msra.mxu0 %v312
  %432 = vmatprep.subr.bf16.mxu0 0
  %433 = vmatpush1.bf16.msra.mxu0 %v313
  %434 = vmatprep.mubr.bf16.mxu0 %v115
  %435 = vmatmul.mubr.bf16.gmra.mrb[0].mxu0 %v114
  %v436 = vpop.f32.mrb[0].mxu0
  %v437 = vadd.f32 %v397, %v436
  %v438 = vpop.f32.mrb[0].mxu0
  %v439 = vpop.f32.mrb[0].mxu0
  %v440 = vpop.f32.mrb[0].mxu0
  %441 = vdwg.mxu0
  %442 = vmatprep.subr.bf16.mxu0 0
  %443 = vmatpush1.bf16.msra.mxu0 %v314
  %444 = vmatprep.subr.bf16.mxu0 0
  %445 = vmatpush1.bf16.msra.mxu0 %v315
  %446 = vmatprep.subr.bf16.mxu0 0
  %447 = vmatpush1.bf16.msra.mxu0 %v316
  %448 = vmatprep.subr.bf16.mxu0 0
  %449 = vmatpush1.bf16.msra.mxu0 %v317
  %450 = vmatprep.subr.bf16.mxu0 0
  %451 = vmatpush1.bf16.msra.mxu0 %v318
  %452 = vmatprep.subr.bf16.mxu0 0
  %453 = vmatpush1.bf16.msra.mxu0 %v319
  %454 = vmatprep.subr.bf16.mxu0 0
  %455 = vmatpush1.bf16.msra.mxu0 %v320
  %456 = vmatprep.subr.bf16.mxu0 0
  %457 = vmatpush1.bf16.msra.mxu0 %v321
  %458 = vmatprep.subr.bf16.mxu0 0
  %459 = vmatpush1.bf16.msra.mxu0 0
  %460 = vmatprep.subr.bf16.mxu0 0
  %461 = vmatpush1.bf16.msra.mxu0 0
  %462 = vmatprep.subr.bf16.mxu0 0
  %463 = vmatpush1.bf16.msra.mxu0 0
  %464 = vmatprep.subr.bf16.mxu0 0
  %465 = vmatpush1.bf16.msra.mxu0 0
  %466 = vmatprep.subr.bf16.mxu0 0
  %467 = vmatpush1.bf16.msra.mxu0 0
  %468 = vmatprep.subr.bf16.mxu0 0
  %469 = vmatpush1.bf16.msra.mxu0 0
  %470 = vmatprep.subr.bf16.mxu0 0
  %471 = vmatpush1.bf16.msra.mxu0 0
  %472 = vmatprep.subr.bf16.mxu0 0
  %473 = vmatpush1.bf16.msra.mxu0 0
  %474 = vmatprep.mubr.bf16.mxu0 0
  %475 = vmatmul.mubr.bf16.gmra.mrb[0].mxu0 %v116
  %v476 = vpop.f32.mrb[0].mxu0
  %v477 = vadd.f32 %v437, %v476
  %v478 = vpop.f32.mrb[0].mxu0
  %v479 = vpop.f32.mrb[0].mxu0
  %v480 = vpop.f32.mrb[0].mxu0
  %481 = vdwg.mxu0
  %v482 = vadd.f32 %v20, %v477
  %483 = vst [vmem:[#allocation2] sm:$0xff] %v482
  // Predicated region
  $region18: #{dqn_forward.6} parent=0 // pred_check
    %p484 = pneg %p15
  $region19: #{dqn_forward.6} parent=0 // pred_check_branch
    %486 = sbr.rel (%p484) target = $region21
  $region20: #{dqn_forward.6} parent=0 // pred_region
    %v487 = vld [vmem:[#allocation2] sm:$0xff]
    %v488 = vld [vmem:[%s2] sm:$0x1]
    %v490 = vlaneseq
    %v491 = vshrl.u32 %v490, 7
    %v492 = vsub.s32 0, %v491
    %v493 = vrot.slane %v488, %v492
    %v495 = vadd.f32 %v487, %v493
    %v496 = vmax.f32 %v495, 0.0
    %497 = vst [vmem:[%s3] sm:$0xff] %v496
  $region21: #{dqn_forward.6} parent=0 // pred_fallthru
    _
  // Predicated region
  $region22: #{dqn_forward.6} parent=0 // pred_check
    _
  $region23: #{dqn_forward.6} parent=0 // pred_check_branch
    %499 = sbr.rel (0) target = $region25
  $region24: #{dqn_forward.6} parent=0 // pred_region
    _
  $region25: #{dqn_forward.6} parent=0 // pred_fallthru
    _
  // Predicated region
  $region26: #{dqn_forward.6} parent=0 // pred_check
    _
  $region27: #{dqn_forward.6} parent=0 // pred_check_branch
    %501 = sbr.rel (0) target = $region29
  $region28: #{dqn_forward.6} parent=0 // pred_region
    _
  $region29: #{dqn_forward.6} parent=0 // pred_fallthru
    _

// kernel: dqn_forward.7
$region0: #{dqn_forward.7}
  #allocation0 [shape = 'u32[]', space=smem, size = 0x4, offset = 0x4, fixed_abs, tag = 'smem constant byte address 0x4 - core index']
  #allocation1 [shape = 'u32[144,128]{1,0:T(1,128)}', space=vmem, size = 0x12000, scoped, tag = 'internal scratch']
  #allocation2 [shape = 'f32[8,512]{1,0:T(8,128)}', space=vmem, size = 0x4000, scoped, tag = 'scratch operand']
  %s0 = inlined_call_operand.vmem [shape: bf16[8,128], index: 0, kind: input, shape index: {}]
  %s1 = inlined_call_operand.vmem [shape: bf16[128,512], index: 1, kind: input, shape index: {}]
  %s2 = inlined_call_operand.vmem [shape: f32[1,512], index: 2, kind: input, shape index: {}]
  %s3 = inlined_call_operand.vmem [shape: bf16[512,128], index: 3, kind: input, shape index: {}]
  %s4 = inlined_call_operand.vmem [shape: f32[1,128], index: 4, kind: input, shape index: {}]
  %s5 = inlined_call_operand.vmem [shape: f32[8,128], index: 5, kind: output, shape index: {}]
  %s6 = sld [smem:[#allocation0]]
  $region38: #{dqn_forward.7} parent=0
    _
  %s8 = ssub.s32 1, %s6
  %s9 = scalar_select 0, %s8, %s6
  // Predicated region
  $region2: #{dqn_forward.7} parent=0 // pred_check
    _
  $region3: #{dqn_forward.7} parent=0 // pred_check_branch
    %11 = sbr.rel (0) target = $region5
  $region4: #{dqn_forward.7} parent=0 // pred_region
    _
  $region5: #{dqn_forward.7} parent=0 // pred_fallthru
    _
  // Predicated region
  $region6: #{dqn_forward.7} parent=0 // pred_check
    _
  $region7: #{dqn_forward.7} parent=0 // pred_check_branch
    %13 = sbr.rel (0) target = $region9
  $region8: #{dqn_forward.7} parent=0 // pred_region
    _
  $region9: #{dqn_forward.7} parent=0 // pred_fallthru
    _
  // Predicated region
  $region10: #{dqn_forward.7} parent=0 // pred_check
    _
  $region11: #{dqn_forward.7} parent=0 // pred_check_branch
    %15 = sbr.rel (0) target = $region13
  $region12: #{dqn_forward.7} parent=0 // pred_region
    _
  $region13: #{dqn_forward.7} parent=0 // pred_fallthru
    _
  // Predicated region
  $region14: #{dqn_forward.7} parent=0 // pred_check
    _
  $region15: #{dqn_forward.7} parent=0 // pred_check_branch
    %17 = sbr.rel (0) target = $region17
  $region16: #{dqn_forward.7} parent=0 // pred_region
    _
  $region17: #{dqn_forward.7} parent=0 // pred_fallthru
    _
  // Predicated region
  $region18: #{dqn_forward.7} parent=0 // pred_check
    _
  $region19: #{dqn_forward.7} parent=0 // pred_check_branch
    %19 = sbr.rel (0) target = $region21
  $region20: #{dqn_forward.7} parent=0 // pred_region
    _
  $region21: #{dqn_forward.7} parent=0 // pred_fallthru
    _
  %p21 = scmp.eq.s32.totalorder 0, 0
  // Predicated region
  $region22: #{dqn_forward.7} parent=0 // pred_check
    %p22 = pneg %p21
  $region23: #{dqn_forward.7} parent=0 // pred_check_branch
    %24 = sbr.rel (%p22) target = $region25
  $region24: #{dqn_forward.7} parent=0 // pred_region
    %25 = vst [vmem:[#allocation2] sm:$0xff] 0.0
    %26 = vst [vmem:[#allocation2 + $0x8] sm:$0xff] 0.0
    %27 = vst [vmem:[#allocation2 + $0x10] sm:$0xff] 0.0
    %28 = vst [vmem:[#allocation2 + $0x18] sm:$0xff] 0.0
  $region25: #{dqn_forward.7} parent=0 // pred_fallthru
    _
  %v29 = vld [vmem:[#allocation2] sm:$0xff]
  %v30 = vld [vmem:[#allocation2 + $0x8] sm:$0xff]
  %v31 = vld [vmem:[#allocation2 + $0x10] sm:$0xff]
  %v32 = vld [vmem:[#allocation2 + $0x18] sm:$0xff]
  %v33 = vld [vmem:[%s0] sm:$0xf]
  %v34 = vld [vmem:[%s1] sm:$0xff]
  %v35 = vld [vmem:[%s1 + $0x8] sm:$0xff]
  %v36 = vld [vmem:[%s1 + $0x10] sm:$0xff]
  %v37 = vld [vmem:[%s1 + $0x18] sm:$0xff]
  %v38 = vld [vmem:[%s1 + $0x20] sm:$0xff]
  %v39 = vld [vmem:[%s1 + $0x28] sm:$0xff]
  %v40 = vld [vmem:[%s1 + $0x30] sm:$0xff]
  %v41 = vld [vmem:[%s1 + $0x38] sm:$0xff]
  %v42 = vld [vmem:[%s1 + $0x40] sm:$0xff]
  %v43 = vld [vmem:[%s1 + $0x48] sm:$0xff]
  %v44 = vld [vmem:[%s1 + $0x50] sm:$0xff]
  %v45 = vld [vmem:[%s1 + $0x58] sm:$0xff]
  %v46 = vld [vmem:[%s1 + $0x60] sm:$0xff]
  %v47 = vld [vmem:[%s1 + $0x68] sm:$0xff]
  %v48 = vld [vmem:[%s1 + $0x70] sm:$0xff]
  %v49 = vld [vmem:[%s1 + $0x78] sm:$0xff]
  %v50 = vld [vmem:[%s1 + $0x80] sm:$0xff]
  %v51 = vld [vmem:[%s1 + $0x88] sm:$0xff]
  %v52 = vld [vmem:[%s1 + $0x90] sm:$0xff]
  %v53 = vld [vmem:[%s1 + $0x98] sm:$0xff]
  %v54 = vld [vmem:[%s1 + $0xa0] sm:$0xff]
  %v55 = vld [vmem:[%s1 + $0xa8] sm:$0xff]
  %v56 = vld [vmem:[%s1 + $0xb0] sm:$0xff]
  %v57 = vld [vmem:[%s1 + $0xb8] sm:$0xff]
  %v58 = vld [vmem:[%s1 + $0xc0] sm:$0xff]
  %v59 = vld [vmem:[%s1 + $0xc8] sm:$0xff]
  %v60 = vld [vmem:[%s1 + $0xd0] sm:$0xff]
  %v61 = vld [vmem:[%s1 + $0xd8] sm:$0xff]
  %v62 = vld [vmem:[%s1 + $0xe0] sm:$0xff]
  %v63 = vld [vmem:[%s1 + $0xe8] sm:$0xff]
  %v64 = vld [vmem:[%s1 + $0xf0] sm:$0xff]
  %v65 = vld [vmem:[%s1 + $0xf8] sm:$0xff]
  %v98 = vunpack.c.l.b16 %v34
  %v99 = vunpack.c.h.b16 %v34
  %v100 = vunpack.c.l.b16 %v35
  %v101 = vunpack.c.h.b16 %v35
  %v102 = vunpack.c.l.b16 %v36
  %v103 = vunpack.c.h.b16 %v36
  %v104 = vunpack.c.l.b16 %v37
  %v105 = vunpack.c.h.b16 %v37
  %v106 = vunpack.c.l.b16 %v38
  %v107 = vunpack.c.h.b16 %v38
  %v108 = vunpack.c.l.b16 %v39
  %v109 = vunpack.c.h.b16 %v39
  %v110 = vunpack.c.l.b16 %v40
  %v111 = vunpack.c.h.b16 %v40
  %v112 = vunpack.c.l.b16 %v41
  %v113 = vunpack.c.h.b16 %v41
  %v114 = vunpack.c.l.b16 %v42
  %v115 = vunpack.c.h.b16 %v42
  %v116 = vunpack.c.l.b16 %v43
  %v117 = vunpack.c.h.b16 %v43
  %v118 = vunpack.c.l.b16 %v44
  %v119 = vunpack.c.h.b16 %v44
  %v120 = vunpack.c.l.b16 %v45
  %v121 = vunpack.c.h.b16 %v45
  %v122 = vunpack.c.l.b16 %v46
  %v123 = vunpack.c.h.b16 %v46
  %v124 = vunpack.c.l.b16 %v47
  %v125 = vunpack.c.h.b16 %v47
  %v126 = vunpack.c.l.b16 %v48
  %v127 = vunpack.c.h.b16 %v48
  %v128 = vunpack.c.l.b16 %v49
  %v129 = vunpack.c.h.b16 %v49
  %v130 = vunpack.c.l.b16 %v50
  %v131 = vunpack.c.h.b16 %v50
  %v132 = vunpack.c.l.b16 %v51
  %v133 = vunpack.c.h.b16 %v51
  %v134 = vunpack.c.l.b16 %v52
  %v135 = vunpack.c.h.b16 %v52
  %v136 = vunpack.c.l.b16 %v53
  %v137 = vunpack.c.h.b16 %v53
  %v138 = vunpack.c.l.b16 %v54
  %v139 = vunpack.c.h.b16 %v54
  %v140 = vunpack.c.l.b16 %v55
  %v141 = vunpack.c.h.b16 %v55
  %v142 = vunpack.c.l.b16 %v56
  %v143 = vunpack.c.h.b16 %v56
  %v144 = vunpack.c.l.b16 %v57
  %v145 = vunpack.c.h.b16 %v57
  %v146 = vunpack.c.l.b16 %v58
  %v147 = vunpack.c.h.b16 %v58
  %v148 = vunpack.c.l.b16 %v59
  %v149 = vunpack.c.h.b16 %v59
  %v150 = vunpack.c.l.b16 %v60
  %v151 = vunpack.c.h.b16 %v60
  %v152 = vunpack.c.l.b16 %v61
  %v153 = vunpack.c.h.b16 %v61
  %v154 = vunpack.c.l.b16 %v62
  %v155 = vunpack.c.h.b16 %v62
  %v156 = vunpack.c.l.b16 %v63
  %v157 = vunpack.c.h.b16 %v63
  %v158 = vunpack.c.l.b16 %v64
  %v159 = vunpack.c.h.b16 %v64
  %v160 = vunpack.c.l.b16 %v65
  %v161 = vunpack.c.h.b16 %v65
  %v162 = vpack.c.b16 %v102, %v98
  %v163 = vpack.c.b16 %v103, %v99
  %v164 = vpack.c.b16 %v104, %v100
  %v165 = vpack.c.b16 %v105, %v101
  %v166 = vpack.c.b16 %v110, %v106
  %v167 = vpack.c.b16 %v111, %v107
  %v168 = vpack.c.b16 %v112, %v108
  %v169 = vpack.c.b16 %v113, %v109
  %v170 = vpack.c.b16 %v118, %v114
  %v171 = vpack.c.b16 %v119, %v115
  %v172 = vpack.c.b16 %v120, %v116
  %v173 = vpack.c.b16 %v121, %v117
  %v174 = vpack.c.b16 %v126, %v122
  %v175 = vpack.c.b16 %v127, %v123
  %v176 = vpack.c.b16 %v128, %v124
  %v177 = vpack.c.b16 %v129, %v125
  %v178 = vpack.c.b16 %v134, %v130
  %v179 = vpack.c.b16 %v135, %v131
  %v180 = vpack.c.b16 %v136, %v132
  %v181 = vpack.c.b16 %v137, %v133
  %v182 = vpack.c.b16 %v142, %v138
  %v183 = vpack.c.b16 %v143, %v139
  %v184 = vpack.c.b16 %v144, %v140
  %v185 = vpack.c.b16 %v145, %v141
  %v186 = vpack.c.b16 %v150, %v146
  %v187 = vpack.c.b16 %v151, %v147
  %v188 = vpack.c.b16 %v152, %v148
  %v189 = vpack.c.b16 %v153, %v149
  %v190 = vpack.c.b16 %v158, %v154
  %v191 = vpack.c.b16 %v159, %v155
  %v192 = vpack.c.b16 %v160, %v156
  %v193 = vpack.c.b16 %v161, %v157
  %226 = vmatprep.subr.bf16.mxu0 %v163
  %227 = vmatpush1.bf16.msra.mxu0 %v162
  %228 = vmatprep.subr.bf16.mxu0 %v167
  %229 = vmatpush1.bf16.msra.mxu0 %v166
  %230 = vmatprep.subr.bf16.mxu0 %v171
  %231 = vmatpush1.bf16.msra.mxu0 %v170
  %232 = vmatprep.subr.bf16.mxu0 %v175
  %233 = vmatpush1.bf16.msra.mxu0 %v174
  %234 = vmatprep.subr.bf16.mxu0 %v179
  %235 = vmatpush1.bf16.msra.mxu0 %v178
  %236 = vmatprep.subr.bf16.mxu0 %v183
  %237 = vmatpush1.bf16.msra.mxu0 %v182
  %238 = vmatprep.subr.bf16.mxu0 %v187
  %239 = vmatpush1.bf16.msra.mxu0 %v186
  %240 = vmatprep.subr.bf16.mxu0 %v191
  %241 = vmatpush1.bf16.msra.mxu0 %v190
  %242 = vmatprep.subr.bf16.mxu0 0
  %243 = vmatpush1.bf16.msra.mxu0 0
  %244 = vmatprep.subr.bf16.mxu0 0
  %245 = vmatpush1.bf16.msra.mxu0 0
  %246 = vmatprep.subr.bf16.mxu0 0
  %247 = vmatpush1.bf16.msra.mxu0 0
  %248 = vmatprep.subr.bf16.mxu0 0
  %249 = vmatpush1.bf16.msra.mxu0 0
  %250 = vmatprep.subr.bf16.mxu0 0
  %251 = vmatpush1.bf16.msra.mxu0 0
  %252 = vmatprep.subr.bf16.mxu0 0
  %253 = vmatpush1.bf16.msra.mxu0 0
  %254 = vmatprep.subr.bf16.mxu0 0
  %255 = vmatpush1.bf16.msra.mxu0 0
  %256 = vmatprep.subr.bf16.mxu0 0
  %257 = vmatpush1.bf16.msra.mxu0 0
  %258 = vmatprep.mubr.bf16.mxu0 0
  %259 = vmatmul.mubr.bf16.gmra.mrb[0].mxu0 %v33
  %v260 = vpop.f32.mrb[0].mxu0
  %v261 = vadd.f32 0.0, %v260
  %v262 = vpop.f32.mrb[0].mxu0
  %v263 = vadd.f32 0.0, %v262
  %v264 = vpop.f32.mrb[0].mxu0
  %v265 = vpop.f32.mrb[0].mxu0
  %266 = vdwg.mxu0
  %267 = vmatprep.subr.bf16.mxu0 %v165
  %268 = vmatpush1.bf16.msra.mxu0 %v164
  %269 = vmatprep.subr.bf16.mxu0 %v169
  %270 = vmatpush1.bf16.msra.mxu0 %v168
  %271 = vmatprep.subr.bf16.mxu0 %v173
  %272 = vmatpush1.bf16.msra.mxu0 %v172
  %273 = vmatprep.subr.bf16.mxu0 %v177
  %274 = vmatpush1.bf16.msra.mxu0 %v176
  %275 = vmatprep.subr.bf16.mxu0 %v181
  %276 = vmatpush1.bf16.msra.mxu0 %v180
  %277 = vmatprep.subr.bf16.mxu0 %v185
  %278 = vmatpush1.bf16.msra.mxu0 %v184
  %279 = vmatprep.subr.bf16.mxu0 %v189
  %280 = vmatpush1.bf16.msra.mxu0 %v188
  %281 = vmatprep.subr.bf16.mxu0 %v193
  %282 = vmatpush1.bf16.msra.mxu0 %v192
  %283 = vmatprep.subr.bf16.mxu0 0
  %284 = vmatpush1.bf16.msra.mxu0 0
  %285 = vmatprep.subr.bf16.mxu0 0
  %286 = vmatpush1.bf16.msra.mxu0 0
  %287 = vmatprep.subr.bf16.mxu0 0
  %288 = vmatpush1.bf16.msra.mxu0 0
  %289 = vmatprep.subr.bf16.mxu0 0
  %290 = vmatpush1.bf16.msra.mxu0 0
  %291 = vmatprep.subr.bf16.mxu0 0
  %292 = vmatpush1.bf16.msra.mxu0 0
  %293 = vmatprep.subr.bf16.mxu0 0
  %294 = vmatpush1.bf16.msra.mxu0 0
  %295 = vmatprep.subr.bf16.mxu0 0
  %296 = vmatpush1.bf16.msra.mxu0 0
  %297 = vmatprep.subr.bf16.mxu0 0
  %298 = vmatpush1.bf16.msra.mxu0 0
  %299 = vmatprep.mubr.bf16.mxu0 0
  %300 = vmatmul.mubr.bf16.gmra.mrb[0].mxu0 %v33
  %v301 = vpop.f32.mrb[0].mxu0
  %v302 = vadd.f32 0.0, %v301
  %v303 = vpop.f32.mrb[0].mxu0
  %v304 = vadd.f32 0.0, %v303
  %v305 = vpop.f32.mrb[0].mxu0
  %v306 = vpop.f32.mrb[0].mxu0
  %307 = vdwg.mxu0
  %v308 = vadd.f32 %v29, %v261
  %v309 = vadd.f32 %v30, %v263
  %v310 = vadd.f32 %v31, %v302
  %v311 = vadd.f32 %v32, %v304
  %312 = vst [vmem:[#allocation2] sm:$0xff] %v308
  %313 = vst [vmem:[#allocation2 + $0x8] sm:$0xff] %v309
  %314 = vst [vmem:[#allocation2 + $0x10] sm:$0xff] %v310
  %315 = vst [vmem:[#allocation2 + $0x18] sm:$0xff] %v311
  // Predicated region
  $region26: #{dqn_forward.7} parent=0 // pred_check
    %p316 = pneg %p21
  $region27: #{dqn_forward.7} parent=0 // pred_check_branch
    %318 = sbr.rel (%p316) target = $region29
  $region28: #{dqn_forward.7} parent=0 // pred_region
    %v319 = vld [vmem:[#allocation2] sm:$0xff]
    %v320 = vld [vmem:[#allocation2 + $0x8] sm:$0xff]
    %v321 = vld [vmem:[#allocation2 + $0x10] sm:$0xff]
    %v322 = vld [vmem:[#allocation2 + $0x18] sm:$0xff]
    %v323 = vld [vmem:[%s2] sm:$0xf]
    %v325 = vlaneseq
    %v326 = vshrl.u32 %v325, 7
    %v327 = vsub.s32 0, %v326
    %v328 = vrot.slane %v323, %v327
    %v329 = vlaneseq
    %v330 = vshrl.u32 %v329, 7
    %v331 = vsub.s32 1, %v330
    %v332 = vrot.slane %v323, %v331
    %v333 = vlaneseq
    %v334 = vshrl.u32 %v333, 7
    %v335 = vsub.s32 2, %v334
    %v336 = vrot.slane %v323, %v335
    %v337 = vlaneseq
    %v338 = vshrl.u32 %v337, 7
    %v339 = vsub.s32 3, %v338
    %v340 = vrot.slane %v323, %v339
    %v345 = vadd.f32 %v319, %v328
    %v346 = vadd.f32 %v320, %v332
    %v347 = vadd.f32 %v321, %v336
    %v348 = vadd.f32 %v322, %v340
    %v349 = vmax.f32 %v345, 0.0
    %v350 = vmax.f32 %v346, 0.0
    %v351 = vmax.f32 %v347, 0.0
    %v352 = vmax.f32 %v348, 0.0
    %v353 = vpack.c.bf16 %v349, %v349
    %v354 = vpack.c.bf16 %v350, %v350
    %v355 = vpack.c.bf16 %v351, %v351
    %v356 = vpack.c.bf16 %v352, %v352
    %v357 = vld [vmem:[%s3] sm:$0xf]
    %v358 = vld [vmem:[%s3 + $0x4] sm:$0xf]
    %v359 = vld [vmem:[%s3 + $0x8] sm:$0xf]
    %v360 = vld [vmem:[%s3 + $0xc] sm:$0xf]
    %v361 = vld [vmem:[%s3 + $0x10] sm:$0xf]
    %v362 = vld [vmem:[%s3 + $0x14] sm:$0xf]
    %v363 = vld [vmem:[%s3 + $0x18] sm:$0xf]
    %v364 = vld [vmem:[%s3 + $0x1c] sm:$0xf]
    %v365 = vld [vmem:[%s3 + $0x20] sm:$0xf]
    %v366 = vld [vmem:[%s3 + $0x24] sm:$0xf]
    %v367 = vld [vmem:[%s3 + $0x28] sm:$0xf]
    %v368 = vld [vmem:[%s3 + $0x2c] sm:$0xf]
    %v369 = vld [vmem:[%s3 + $0x30] sm:$0xf]
    %v370 = vld [vmem:[%s3 + $0x34] sm:$0xf]
    %v371 = vld [vmem:[%s3 + $0x38] sm:$0xf]
    %v372 = vld [vmem:[%s3 + $0x3c] sm:$0xf]
    %v373 = vld [vmem:[%s3 + $0x40] sm:$0xf]
    %v374 = vld [vmem:[%s3 + $0x44] sm:$0xf]
    %v375 = vld [vmem:[%s3 + $0x48] sm:$0xf]
    %v376 = vld [vmem:[%s3 + $0x4c] sm:$0xf]
    %v377 = vld [vmem:[%s3 + $0x50] sm:$0xf]
    %v378 = vld [vmem:[%s3 + $0x54] sm:$0xf]
    %v379 = vld [vmem:[%s3 + $0x58] sm:$0xf]
    %v380 = vld [vmem:[%s3 + $0x5c] sm:$0xf]
    %v381 = vld [vmem:[%s3 + $0x60] sm:$0xf]
    %v382 = vld [vmem:[%s3 + $0x64] sm:$0xf]
    %v383 = vld [vmem:[%s3 + $0x68] sm:$0xf]
    %v384 = vld [vmem:[%s3 + $0x6c] sm:$0xf]
    %v385 = vld [vmem:[%s3 + $0x70] sm:$0xf]
    %v386 = vld [vmem:[%s3 + $0x74] sm:$0xf]
    %v387 = vld [vmem:[%s3 + $0x78] sm:$0xf]
    %v388 = vld [vmem:[%s3 + $0x7c] sm:$0xf]
    %v389 = vld [vmem:[%s3 + $0x80] sm:$0xf]
    %v390 = vld [vmem:[%s3 + $0x84] sm:$0xf]
    %v391 = vld [vmem:[%s3 + $0x88] sm:$0xf]
    %v392 = vld [vmem:[%s3 + $0x8c] sm:$0xf]
    %v393 = vld [vmem:[%s3 + $0x90] sm:$0xf]
    %v394 = vld [vmem:[%s3 + $0x94] sm:$0xf]
    %v395 = vld [vmem:[%s3 + $0x98] sm:$0xf]
    %v396 = vld [vmem:[%s3 + $0x9c] sm:$0xf]
    %v397 = vld [vmem:[%s3 + $0xa0] sm:$0xf]
    %v398 = vld [vmem:[%s3 + $0xa4] sm:$0xf]
    %v399 = vld [vmem:[%s3 + $0xa8] sm:$0xf]
    %v400 = vld [vmem:[%s3 + $0xac] sm:$0xf]
    %v401 = vld [vmem:[%s3 + $0xb0] sm:$0xf]
    %v402 = vld [vmem:[%s3 + $0xb4] sm:$0xf]
    %v403 = vld [vmem:[%s3 + $0xb8] sm:$0xf]
    %v404 = vld [vmem:[%s3 + $0xbc] sm:$0xf]
    %v405 = vld [vmem:[%s3 + $0xc0] sm:$0xf]
    %v406 = vld [vmem:[%s3 + $0xc4] sm:$0xf]
    %v407 = vld [vmem:[%s3 + $0xc8] sm:$0xf]
    %v408 = vld [vmem:[%s3 + $0xcc] sm:$0xf]
    %v409 = vld [vmem:[%s3 + $0xd0] sm:$0xf]
    %v410 = vld [vmem:[%s3 + $0xd4] sm:$0xf]
    %v411 = vld [vmem:[%s3 + $0xd8] sm:$0xf]
    %v412 = vld [vmem:[%s3 + $0xdc] sm:$0xf]
    %v413 = vld [vmem:[%s3 + $0xe0] sm:$0xf]
    %v414 = vld [vmem:[%s3 + $0xe4] sm:$0xf]
    %v415 = vld [vmem:[%s3 + $0xe8] sm:$0xf]
    %v416 = vld [vmem:[%s3 + $0xec] sm:$0xf]
    %v417 = vld [vmem:[%s3 + $0xf0] sm:$0xf]
    %v418 = vld [vmem:[%s3 + $0xf4] sm:$0xf]
    %v419 = vld [vmem:[%s3 + $0xf8] sm:$0xf]
    %v420 = vld [vmem:[%s3 + $0xfc] sm:$0xf]
    %v421 = vld [vmem:[%s4] sm:$0x1]
    %v423 = vlaneseq
    %v424 = vshrl.u32 %v423, 7
    %v425 = vsub.s32 0, %v424
    %v426 = vrot.slane %v421, %v425
    %v492 = vunpack.c.l.b16 %v357
    %v493 = vunpack.c.l.b16 %v358
    %v494 = vunpack.c.l.b16 %v359
    %v495 = vunpack.c.l.b16 %v360
    %v496 = vunpack.c.l.b16 %v361
    %v497 = vunpack.c.l.b16 %v362
    %v498 = vunpack.c.l.b16 %v363
    %v499 = vunpack.c.l.b16 %v364
    %v500 = vunpack.c.l.b16 %v365
    %v501 = vunpack.c.l.b16 %v366
    %v502 = vunpack.c.l.b16 %v367
    %v503 = vunpack.c.l.b16 %v368
    %v504 = vunpack.c.l.b16 %v369
    %v505 = vunpack.c.l.b16 %v370
    %v506 = vunpack.c.l.b16 %v371
    %v507 = vunpack.c.l.b16 %v372
    %v508 = vunpack.c.l.b16 %v373
    %v509 = vunpack.c.l.b16 %v374
    %v510 = vunpack.c.l.b16 %v375
    %v511 = vunpack.c.l.b16 %v376
    %v512 = vunpack.c.l.b16 %v377
    %v513 = vunpack.c.l.b16 %v378
    %v514 = vunpack.c.l.b16 %v379
    %v515 = vunpack.c.l.b16 %v380
    %v516 = vunpack.c.l.b16 %v381
    %v517 = vunpack.c.l.b16 %v382
    %v518 = vunpack.c.l.b16 %v383
    %v519 = vunpack.c.l.b16 %v384
    %v520 = vunpack.c.l.b16 %v385
    %v521 = vunpack.c.l.b16 %v386
    %v522 = vunpack.c.l.b16 %v387
    %v523 = vunpack.c.l.b16 %v388
    %v524 = vunpack.c.l.b16 %v389
    %v525 = vunpack.c.l.b16 %v390
    %v526 = vunpack.c.l.b16 %v391
    %v527 = vunpack.c.l.b16 %v392
    %v528 = vunpack.c.l.b16 %v393
    %v529 = vunpack.c.l.b16 %v394
    %v530 = vunpack.c.l.b16 %v395
    %v531 = vunpack.c.l.b16 %v396
    %v532 = vunpack.c.l.b16 %v397
    %v533 = vunpack.c.l.b16 %v398
    %v534 = vunpack.c.l.b16 %v399
    %v535 = vunpack.c.l.b16 %v400
    %v536 = vunpack.c.l.b16 %v401
    %v537 = vunpack.c.l.b16 %v402
    %v538 = vunpack.c.l.b16 %v403
    %v539 = vunpack.c.l.b16 %v404
    %v540 = vunpack.c.l.b16 %v405
    %v541 = vunpack.c.l.b16 %v406
    %v542 = vunpack.c.l.b16 %v407
    %v543 = vunpack.c.l.b16 %v408
    %v544 = vunpack.c.l.b16 %v409
    %v545 = vunpack.c.l.b16 %v410
    %v546 = vunpack.c.l.b16 %v411
    %v547 = vunpack.c.l.b16 %v412
    %v548 = vunpack.c.l.b16 %v413
    %v549 = vunpack.c.l.b16 %v414
    %v550 = vunpack.c.l.b16 %v415
    %v551 = vunpack.c.l.b16 %v416
    %v552 = vunpack.c.l.b16 %v417
    %v553 = vunpack.c.l.b16 %v418
    %v554 = vunpack.c.l.b16 %v419
    %v555 = vunpack.c.l.b16 %v420
    %v556 = vpack.c.b16 %v493, %v492
    %v557 = vpack.c.b16 %v495, %v494
    %v558 = vpack.c.b16 %v497, %v496
    %v559 = vpack.c.b16 %v499, %v498
    %v560 = vpack.c.b16 %v501, %v500
    %v561 = vpack.c.b16 %v503, %v502
    %v562 = vpack.c.b16 %v505, %v504
    %v563 = vpack.c.b16 %v507, %v506
    %v564 = vpack.c.b16 %v509, %v508
    %v565 = vpack.c.b16 %v511, %v510
    %v566 = vpack.c.b16 %v513, %v512
    %v567 = vpack.c.b16 %v515, %v514
    %v568 = vpack.c.b16 %v517, %v516
    %v569 = vpack.c.b16 %v519, %v518
    %v570 = vpack.c.b16 %v521, %v520
    %v571 = vpack.c.b16 %v523, %v522
    %v572 = vpack.c.b16 %v525, %v524
    %v573 = vpack.c.b16 %v527, %v526
    %v574 = vpack.c.b16 %v529, %v528
    %v575 = vpack.c.b16 %v531, %v530
    %v576 = vpack.c.b16 %v533, %v532
    %v577 = vpack.c.b16 %v535, %v534
    %v578 = vpack.c.b16 %v537, %v536
    %v579 = vpack.c.b16 %v539, %v538
    %v580 = vpack.c.b16 %v541, %v540
    %v581 = vpack.c.b16 %v543, %v542
    %v582 = vpack.c.b16 %v545, %v544
    %v583 = vpack.c.b16 %v547, %v546
    %v584 = vpack.c.b16 %v549, %v548
    %v585 = vpack.c.b16 %v551, %v550
    %v586 = vpack.c.b16 %v553, %v552
    %v587 = vpack.c.b16 %v555, %v554
    %620 = vmatprep.subr.bf16.mxu0 0
    %621 = vmatpush1.bf16.msra.mxu0 %v556
    %622 = vmatprep.subr.bf16.mxu0 0
    %623 = vmatpush1.bf16.msra.mxu0 %v557
    %624 = vmatprep.subr.bf16.mxu0 0
    %625 = vmatpush1.bf16.msra.mxu0 %v558
    %626 = vmatprep.subr.bf16.mxu0 0
    %627 = vmatpush1.bf16.msra.mxu0 %v559
    %628 = vmatprep.subr.bf16.mxu0 0
    %629 = vmatpush1.bf16.msra.mxu0 %v560
    %630 = vmatprep.subr.bf16.mxu0 0
    %631 = vmatpush1.bf16.msra.mxu0 %v561
    %632 = vmatprep.subr.bf16.mxu0 0
    %633 = vmatpush1.bf16.msra.mxu0 %v562
    %634 = vmatprep.subr.bf16.mxu0 0
    %635 = vmatpush1.bf16.msra.mxu0 %v563
    %636 = vmatprep.subr.bf16.mxu0 0
    %637 = vmatpush1.bf16.msra.mxu0 %v564
    %638 = vmatprep.subr.bf16.mxu0 0
    %639 = vmatpush1.bf16.msra.mxu0 %v565
    %640 = vmatprep.subr.bf16.mxu0 0
    %641 = vmatpush1.bf16.msra.mxu0 %v566
    %642 = vmatprep.subr.bf16.mxu0 0
    %643 = vmatpush1.bf16.msra.mxu0 %v567
    %644 = vmatprep.subr.bf16.mxu0 0
    %645 = vmatpush1.bf16.msra.mxu0 %v568
    %646 = vmatprep.subr.bf16.mxu0 0
    %647 = vmatpush1.bf16.msra.mxu0 %v569
    %648 = vmatprep.subr.bf16.mxu0 0
    %649 = vmatpush1.bf16.msra.mxu0 %v570
    %650 = vmatprep.subr.bf16.mxu0 0
    %651 = vmatpush1.bf16.msra.mxu0 %v571
    %652 = vmatprep.mubr.bf16.mxu0 %v354
    %653 = vmatmul.mubr.bf16.gmra.mrb[0].mxu0 %v353
    %v654 = vpop.f32.mrb[0].mxu0
    %v655 = vadd.f32 %v426, %v654
    %v656 = vpop.f32.mrb[0].mxu0
    %v657 = vpop.f32.mrb[0].mxu0
    %v658 = vpop.f32.mrb[0].mxu0
    %659 = vdwg.mxu0
    %660 = vmatprep.subr.bf16.mxu0 0
    %661 = vmatpush1.bf16.msra.mxu0 %v572
    %662 = vmatprep.subr.bf16.mxu0 0
    %663 = vmatpush1.bf16.msra.mxu0 %v573
    %664 = vmatprep.subr.bf16.mxu0 0
    %665 = vmatpush1.bf16.msra.mxu0 %v574
    %666 = vmatprep.subr.bf16.mxu0 0
    %667 = vmatpush1.bf16.msra.mxu0 %v575
    %668 = vmatprep.subr.bf16.mxu0 0
    %669 = vmatpush1.bf16.msra.mxu0 %v576
    %670 = vmatprep.subr.bf16.mxu0 0
    %671 = vmatpush1.bf16.msra.mxu0 %v577
    %672 = vmatprep.subr.bf16.mxu0 0
    %673 = vmatpush1.bf16.msra.mxu0 %v578
    %674 = vmatprep.subr.bf16.mxu0 0
    %675 = vmatpush1.bf16.msra.mxu0 %v579
    %676 = vmatprep.subr.bf16.mxu0 0
    %677 = vmatpush1.bf16.msra.mxu0 %v580
    %678 = vmatprep.subr.bf16.mxu0 0
    %679 = vmatpush1.bf16.msra.mxu0 %v581
    %680 = vmatprep.subr.bf16.mxu0 0
    %681 = vmatpush1.bf16.msra.mxu0 %v582
    %682 = vmatprep.subr.bf16.mxu0 0
    %683 = vmatpush1.bf16.msra.mxu0 %v583
    %684 = vmatprep.subr.bf16.mxu0 0
    %685 = vmatpush1.bf16.msra.mxu0 %v584
    %686 = vmatprep.subr.bf16.mxu0 0
    %687 = vmatpush1.bf16.msra.mxu0 %v585
    %688 = vmatprep.subr.bf16.mxu0 0
    %689 = vmatpush1.bf16.msra.mxu0 %v586
    %690 = vmatprep.subr.bf16.mxu0 0
    %691 = vmatpush1.bf16.msra.mxu0 %v587
    %692 = vmatprep.mubr.bf16.mxu0 %v356
    %693 = vmatmul.mubr.bf16.gmra.mrb[0].mxu0 %v355
    %v694 = vpop.f32.mrb[0].mxu0
    %v695 = vadd.f32 %v655, %v694
    %v696 = vpop.f32.mrb[0].mxu0
    %v697 = vpop.f32.mrb[0].mxu0
    %v698 = vpop.f32.mrb[0].mxu0
    %699 = vdwg.mxu0
    %700 = vst [vmem:[%s5] sm:$0xff] %v695
  $region29: #{dqn_forward.7} parent=0 // pred_fallthru
    _
  // Predicated region
  $region30: #{dqn_forward.7} parent=0 // pred_check
    _
  $region31: #{dqn_forward.7} parent=0 // pred_check_branch
    %702 = sbr.rel (0) target = $region33
  $region32: #{dqn_forward.7} parent=0 // pred_region
    _
  $region33: #{dqn_forward.7} parent=0 // pred_fallthru
    _
  // Predicated region
  $region34: #{dqn_forward.7} parent=0 // pred_check
    _
  $region35: #{dqn_forward.7} parent=0 // pred_check_branch
    %704 = sbr.rel (0) target = $region37
  $region36: #{dqn_forward.7} parent=0 // pred_region
    _
  $region37: #{dqn_forward.7} parent=0 // pred_fallthru
    _

</llo_original>
